<compile_context>
chip_gen: v7x
topology: tpu7x:2x2x1
jax: 0.10.0
libtpu: 0.0.40
codegen_flags: <defaults>
</compile_context>

<pallas_src>
import jax
import jax.numpy as jnp
from jax.experimental import pallas as pl
from jax.experimental.pallas import tpu as pltpu

N_EMBD = 64
N_HEAD = 8
HEAD_SIZE = N_EMBD // N_HEAD
N_LAYER = 6
BLOCK_SIZE = 128      # max context length (causal-mask capacity)
VOCAB_SIZE = 128      # synthetic BPE vocab size (deterministic stand-in for len(encoder.vocab))
LN_EPS = 1e-5         # PyTorch nn.LayerNorm default
SCALE = float(N_EMBD) ** -0.5   # PyTorch Head.forward scales by C**-0.5 (C = n_embd)


def _layernorm(h, g, b):
    """LayerNorm in f32 (biased variance, eps=1e-5); g/b are (1, C)."""
    mu = jnp.mean(h, axis=-1, keepdims=True)
    var = jnp.mean((h - mu) ** 2, axis=-1, keepdims=True)
    return (h - mu) * jax.lax.rsqrt(var + LN_EPS) * g + b


def transformer_kernel(x_ref, ln_ref, wqkv_ref, wo_ref, bo_ref,
                       w1_ref, b1_ref, w2_ref, b2_ref,
                       lnf_ref, wlm_ref, blm_ref, o_ref,
                       x_sc, bias_sc):
    """One grid step = (batch row b, layer l). Residual stream stays in VMEM scratch."""
    l = pl.program_id(1)
    T = x_sc.shape[0]
    bf16 = jnp.bfloat16

    @pl.when(l == 0)
    def _init():
        # Load embeddings for this row and build the (T,T) additive causal bias once.
        x_sc[...] = x_ref[0]
        row = jax.lax.broadcasted_iota(jnp.int32, (T, T), 0)
        col = jax.lax.broadcasted_iota(jnp.int32, (T, T), 1)
        bias_sc[...] = jnp.where(row >= col, 0.0, -1e30).astype(jnp.float32)

    x = x_sc[...]                               # (T, C) f32 residual stream
    bias = bias_sc[...]                         # (T, T) f32 causal bias (0 / -1e30)
    ln = ln_ref[0]                              # (4, 1, C): ln1_g, ln1_b, ln2_g, ln2_b

    # ---- multi-head causal self-attention:  x = x + proj(attn(ln1(x))) ----
    h = _layernorm(x, ln[0], ln[1]).astype(bf16)                         # (T, C)
    # Fused QKV projection: one K=64, N=192 MXU matmul (Wq pre-scaled by SCALE).
    qkv = jnp.dot(h, wqkv_ref[0],
                  preferred_element_type=jnp.float32).astype(bf16)       # (T, 3C)
    heads = []
    for hd in range(N_HEAD):                    # one head at a time: only one (T,T) live
        q = qkv[:, hd * HEAD_SIZE:(hd + 1) * HEAD_SIZE]                  # (T, hs) bf16
        k = qkv[:, N_EMBD + hd * HEAD_SIZE:N_EMBD + (hd + 1) * HEAD_SIZE]
        v = qkv[:, 2 * N_EMBD + hd * HEAD_SIZE:2 * N_EMBD + (hd + 1) * HEAD_SIZE]
        s = jnp.dot(q, k.T, preferred_element_type=jnp.float32) + bias   # (T, T) f32
        s = s - jnp.max(s, axis=-1, keepdims=True)
        p = jnp.exp(s)
        p = p * pl.reciprocal(jnp.sum(p, axis=-1, keepdims=True), approx=True)
        heads.append(jnp.dot(p.astype(bf16), v,
                             preferred_element_type=jnp.float32).astype(bf16))
    att = jnp.concatenate(heads, axis=-1)                                # (T, C) == torch.cat
    x = x + jnp.dot(att, wo_ref[0], preferred_element_type=jnp.float32) + bo_ref[0]

    # ---- feed-forward:  x = x + W2 relu(W1 ln2(x) + b1) + b2  (Dropout = identity) ----
    h2 = _layernorm(x, ln[2], ln[3]).astype(bf16)
    ff = jnp.dot(h2, w1_ref[0], preferred_element_type=jnp.float32) + b1_ref[0]
    ff = jnp.maximum(ff, 0.0).astype(bf16)
    x = x + jnp.dot(ff, w2_ref[0], preferred_element_type=jnp.float32) + b2_ref[0]

    x_sc[...] = x

    # ---- final LayerNorm + lm_head (only HBM write; last dim 128 is lane-dense) ----
    @pl.when(l == N_LAYER - 1)
    def _finalize():
        hf = _layernorm(x, lnf_ref[0], lnf_ref[1]).astype(bf16)
        o_ref[0] = jnp.dot(hf, wlm_ref[...],
                           preferred_element_type=jnp.float32) + blm_ref[...]


def _layer_spec(arr):
    """Per-layer weight block: (1, ...) indexed by the layer grid axis."""
    rest = arr.ndim - 1
    return pl.BlockSpec((1,) + arr.shape[1:],
                        lambda b, l, r=rest: (l,) + (0,) * r)


def _full_spec(arr):
    """Whole (small) array, DMA'd once."""
    n = arr.ndim
    return pl.BlockSpec(arr.shape, lambda b, l, n=n: (0,) * n)


def _pack_params(params):
    """Stack per-layer PyTorch-shaped weights into kernel layout (bf16 matmul weights)."""
    bf = jnp.bfloat16
    ln_p, w_qkv, w_out, b_out, w1s, b1s, w2s, b2s = ([] for _ in range(8))
    for layer in params["blocks"]:
        ln_p.append(jnp.stack([layer["ln1_g"], layer["ln1_b"],
                               layer["ln2_g"], layer["ln2_b"]]))           # (4, 1, C)
        # Fused QKV columns = [per-head q | per-head k | per-head v]; fold SCALE into Wq.
        w_qkv.append(jnp.concatenate(
            [layer["wq"] * SCALE, layer["wk"], layer["wv"]], axis=1))      # (C, 3C)
        w_out.append(layer["wo"])                                          # (C, C)
        b_out.append(layer["bo"])
        w1s.append(layer["w1"]); b1s.append(layer["b1"])
        w2s.append(layer["w2"]); b2s.append(layer["b2"])
    return (
        jnp.stack(ln_p),                      # (L, 4, 1, C)   f32
        jnp.stack(w_qkv).astype(bf),          # (L, C, 3C)     bf16
        jnp.stack(w_out).astype(bf),          # (L, C, C)      bf16
        jnp.stack(b_out),                     # (L, 1, C)      f32
        jnp.stack(w1s).astype(bf),            # (L, C, 4C)     bf16
        jnp.stack(b1s),                       # (L, 1, 4C)     f32
        jnp.stack(w2s).astype(bf),            # (L, 4C, C)     bf16
        jnp.stack(b2s),                       # (L, 1, C)      f32
        jnp.stack([params["lnf_g"], params["lnf_b"]]),   # (2, 1, C) f32
        params["wlm"].astype(bf),             # (C, V)         bf16
        params["blm"],                        # (1, V)         f32
    )


def transformer_forward(X, params):
    """X: (B, T) int32 token ids.  Returns logits (B, T, VOCAB_SIZE)."""
    B, T = X.shape
    assert T <= BLOCK_SIZE
    tok = jnp.take(params["tok_emb"], X, axis=0)          # (B, T, C) embedding gather (XLA glue)
    pos = params["pos_emb"][:T][None, :, :]               # (1, T, C)
    x = (tok + pos).astype(jnp.float32)

    weights = _pack_params(params)
    ln_w, wqkv, wo, bo, w1, b1, w2, b2, lnf, wlm, blm = weights

    in_specs = [pl.BlockSpec((1, T, N_EMBD), lambda b, l: (b, 0, 0))]
    in_specs += [_layer_spec(w) for w in (ln_w, wqkv, wo, bo, w1, b1, w2, b2)]
    in_specs += [_full_spec(w) for w in (lnf, wlm, blm)]

    logits = pl.pallas_call(
        transformer_kernel,
        out_shape=jax.ShapeDtypeStruct((B, T, VOCAB_SIZE), jnp.float32),
        grid=(B, N_LAYER),
        in_specs=in_specs,
        out_specs=pl.BlockSpec((1, T, VOCAB_SIZE), lambda b, l: (b, 0, 0)),
        scratch_shapes=[pltpu.VMEM((T, N_EMBD), jnp.float32),   # residual stream carry
                        pltpu.VMEM((T, T), jnp.float32)],       # causal additive bias
        compiler_params=pltpu.CompilerParams(
            dimension_semantics=("parallel", "arbitrary")),
    )(x, *weights)
    # TODO(synk): cross-entropy loss path (targets != None), train-mode dropout, and
    # generate() sampling are host-side / plain-JAX concerns and not part of the kernel.
    return logits


def init_params(key):
    def nrm(k, shape, scale=0.02):
        return scale * jax.random.normal(k, shape, dtype=jnp.float32)

    keys = jax.random.split(key, 3 + N_LAYER)
    params = {
        "tok_emb": nrm(keys[0], (VOCAB_SIZE, N_EMBD)),
        "pos_emb": nrm(keys[1], (BLOCK_SIZE, N_EMBD)),
    }
    blocks = []
    for li in range(N_LAYER):
        ks = jax.random.split(keys[2 + li], 6)
        blocks.append({
            "ln1_g": jnp.ones((1, N_EMBD), jnp.float32),
            "ln1_b": jnp.zeros((1, N_EMBD), jnp.float32),
            "wq": nrm(ks[0], (N_EMBD, N_EMBD)),     # concat of 8 per-head (64,8) query weights
            "wk": nrm(ks[1], (N_EMBD, N_EMBD)),
            "wv": nrm(ks[2], (N_EMBD, N_EMBD)),
            "wo": nrm(ks[3], (N_EMBD, N_EMBD)),     # MultiHeadAttention.proj
            "bo": jnp.zeros((1, N_EMBD), jnp.float32),
            "ln2_g": jnp.ones((1, N_EMBD), jnp.float32),
            "ln2_b": jnp.zeros((1, N_EMBD), jnp.float32),
            "w1": nrm(ks[4], (N_EMBD, 4 * N_EMBD)),
            "b1": jnp.zeros((1, 4 * N_EMBD), jnp.float32),
            "w2": nrm(ks[5], (4 * N_EMBD, N_EMBD)),
            "b2": jnp.zeros((1, N_EMBD), jnp.float32),
        })
    params["blocks"] = blocks
    kf = jax.random.split(keys[-1], 2)
    params["lnf_g"] = jnp.ones((1, N_EMBD), jnp.float32)
    params["lnf_b"] = jnp.zeros((1, N_EMBD), jnp.float32)
    params["wlm"] = nrm(kf[0], (N_EMBD, VOCAB_SIZE))
    params["blm"] = jnp.zeros((1, VOCAB_SIZE), jnp.float32)
    return params


def reference_forward(X, params):
    """Pure-JAX f32 reference mirroring the PyTorch module (for a sanity check)."""
    B, T = X.shape
    x = jnp.take(params["tok_emb"], X, axis=0) + params["pos_emb"][:T][None]
    causal = jnp.arange(T)[:, None] >= jnp.arange(T)[None, :]

    def ln(h, g, b):
        mu = jnp.mean(h, -1, keepdims=True)
        var = jnp.mean((h - mu) ** 2, -1, keepdims=True)
        return (h - mu) * jax.lax.rsqrt(var + LN_EPS) * g + b

    for layer in params["blocks"]:
        h = ln(x, layer["ln1_g"], layer["ln1_b"])
        q, k, v = h @ layer["wq"], h @ layer["wk"], h @ layer["wv"]
        heads = []
        for hd in range(N_HEAD):
            sl = slice(hd * HEAD_SIZE, (hd + 1) * HEAD_SIZE)
            wei = (q[..., sl] @ jnp.swapaxes(k[..., sl], -1, -2)) * SCALE
            wei = jnp.where(causal, wei, -jnp.inf)
            heads.append(jax.nn.softmax(wei, axis=-1) @ v[..., sl])
        x = x + jnp.concatenate(heads, -1) @ layer["wo"] + layer["bo"]
        h2 = ln(x, layer["ln2_g"], layer["ln2_b"])
        x = x + jax.nn.relu(h2 @ layer["w1"] + layer["b1"]) @ layer["w2"] + layer["b2"]
    h = ln(x, params["lnf_g"], params["lnf_b"])
    return h @ params["wlm"] + params["blm"]


if __name__ == "__main__":
    key = jax.random.PRNGKey(0)
    pk, xk = jax.random.split(key)
    params = init_params(pk)

    B, T = 2, 8                                    # small sequence, T <= block_size, B >= 2
    X = jax.random.randint(xk, (B, T), 0, VOCAB_SIZE, dtype=jnp.int32)

    fwd = jax.jit(transformer_forward)
    logits = jax.block_until_ready(fwd(X, params))
    assert logits.shape == (B, T, VOCAB_SIZE), logits.shape
    assert bool(jnp.all(jnp.isfinite(logits)))

    ref = jax.block_until_ready(reference_forward(X, params))
    max_err = float(jnp.max(jnp.abs(logits - ref)))
    assert max_err < 5e-2, f"kernel vs reference max abs diff {max_err}"

    print("KERNEL_OK")
</pallas_src>

<mosaic_0001>
module attributes {stable_mosaic.version = 11 : i64} {
  func.func @transformer_kernel(%arg0: i32, %arg1: i32, %arg2: memref<1x8x64xf32, #tpu.memory_space<vmem>>, %arg3: memref<1x4x1x64xf32, #tpu.memory_space<vmem>>, %arg4: memref<1x64x192xbf16, #tpu.memory_space<vmem>>, %arg5: memref<1x64x64xbf16, #tpu.memory_space<vmem>>, %arg6: memref<1x1x64xf32, #tpu.memory_space<vmem>>, %arg7: memref<1x64x256xbf16, #tpu.memory_space<vmem>>, %arg8: memref<1x1x256xf32, #tpu.memory_space<vmem>>, %arg9: memref<1x256x64xbf16, #tpu.memory_space<vmem>>, %arg10: memref<1x1x64xf32, #tpu.memory_space<vmem>>, %arg11: memref<2x1x64xf32, #tpu.memory_space<vmem>>, %arg12: memref<64x128xbf16, #tpu.memory_space<vmem>>, %arg13: memref<1x128xf32, #tpu.memory_space<vmem>>, %arg14: memref<1x8x128xf32, #tpu.memory_space<vmem>>, %arg15: memref<8x64xf32, #tpu.memory_space<vmem>>, %arg16: memref<8x8xf32, #tpu.memory_space<vmem>>) attributes {dimension_semantics = [#tpu.dimension_semantics<parallel>, #tpu.dimension_semantics<arbitrary>], iteration_bounds = array<i64: 2, 6>, scalar_prefetch = 0 : i64, scratch_operands = 2 : i64, tpu.core_type = #tpu.core_type<tc>, window_params = [{transform_indices = @transform_0, window_bounds = array<i64: 1, 8, 64>}, {transform_indices = @transform_1, window_bounds = array<i64: 1, 4, 1, 64>}, {transform_indices = @transform_2, window_bounds = array<i64: 1, 64, 192>}, {transform_indices = @transform_3, window_bounds = array<i64: 1, 64, 64>}, {transform_indices = @transform_4, window_bounds = array<i64: 1, 1, 64>}, {transform_indices = @transform_5, window_bounds = array<i64: 1, 64, 256>}, {transform_indices = @transform_6, window_bounds = array<i64: 1, 1, 256>}, {transform_indices = @transform_7, window_bounds = array<i64: 1, 256, 64>}, {transform_indices = @transform_8, window_bounds = array<i64: 1, 1, 64>}, {pipeline_mode = #tpu.pipeline_mode<synchronous>, transform_indices = @transform_9, window_bounds = array<i64: 2, 1, 64>}, {pipeline_mode = #tpu.pipeline_mode<synchronous>, transform_indices = @transform_10, window_bounds = array<i64: 64, 128>}, {pipeline_mode = #tpu.pipeline_mode<synchronous>, transform_indices = @transform_11, window_bounds = array<i64: 1, 128>}, {transform_indices = @transform_12, window_bounds = array<i64: 1, 8, 128>}]} {
    %c0_i32 = arith.constant 0 : i32
    %0 = arith.cmpi eq, %arg1, %c0_i32 : i32
    %1 = arith.extui %0 : i1 to i32
    %c0_i32_0 = arith.constant 0 : i32
    %2 = arith.cmpi ne, %1, %c0_i32_0 : i32
    scf.if %2 {
      %c0_78 = arith.constant 0 : index
      %c0_79 = arith.constant 0 : index
      %c0_80 = arith.constant 0 : index
      %248 = vector.load %arg2[%c0_78, %c0_79, %c0_80] : memref<1x8x64xf32, #tpu.memory_space<vmem>>, vector<1x8x64xf32>
      %249 = vector.shape_cast %248 : vector<1x8x64xf32> to vector<8x64xf32>
      %c0_81 = arith.constant 0 : index
      %c0_82 = arith.constant 0 : index
      %250 = vector.load %arg15[%c0_81, %c0_82] : memref<8x64xf32, #tpu.memory_space<vmem>>, vector<8x64xf32>
      tpu.vector_store %arg15[%c0_81, %c0_82], %249 {strides = array<i32>} : memref<8x64xf32, #tpu.memory_space<vmem>>, vector<8x64xf32>,
      %251 = tpu.iota {dimensions = array<i32: 0>} : vector<8x8xi32>
      %252 = tpu.iota {dimensions = array<i32: 1>} : vector<8x8xi32>
      %253 = arith.cmpi sge, %251, %252 : vector<8x8xi32>
      %cst_83 = arith.constant 0.000000e+00 : f32
      %cst_84 = arith.constant -1.000000e+30 : f32
      %254 = vector.broadcast %cst_83 : f32 to vector<8x8xf32>
      %255 = vector.broadcast %cst_84 : f32 to vector<8x8xf32>
      %256 = arith.select %253, %254, %255 : vector<8x8xi1>, vector<8x8xf32>
      %c0_85 = arith.constant 0 : index
      %c0_86 = arith.constant 0 : index
      %257 = vector.load %arg16[%c0_85, %c0_86] : memref<8x8xf32, #tpu.memory_space<vmem>>, vector<8x8xf32>
      tpu.vector_store %arg16[%c0_85, %c0_86], %256 {strides = array<i32>} : memref<8x8xf32, #tpu.memory_space<vmem>>, vector<8x8xf32>,
    } else {
    }
    %c0 = arith.constant 0 : index
    %c0_1 = arith.constant 0 : index
    %3 = vector.load %arg15[%c0, %c0_1] : memref<8x64xf32, #tpu.memory_space<vmem>>, vector<8x64xf32>
    %c0_2 = arith.constant 0 : index
    %c0_3 = arith.constant 0 : index
    %4 = vector.load %arg16[%c0_2, %c0_3] : memref<8x8xf32, #tpu.memory_space<vmem>>, vector<8x8xf32>
    %c0_4 = arith.constant 0 : index
    %c0_5 = arith.constant 0 : index
    %c0_6 = arith.constant 0 : index
    %c0_7 = arith.constant 0 : index
    %5 = vector.load %arg3[%c0_4, %c0_5, %c0_6, %c0_7] : memref<1x4x1x64xf32, #tpu.memory_space<vmem>>, vector<1x4x1x64xf32>
    %6 = vector.shape_cast %5 : vector<1x4x1x64xf32> to vector<4x1x64xf32>
    %7 = vector.extract_strided_slice %6 {offsets = [0, 0, 0], sizes = [1, 1, 64], strides = [1, 1, 1]} : vector<4x1x64xf32> to vector<1x1x64xf32>
    %8 = vector.shape_cast %7 : vector<1x1x64xf32> to vector<1x64xf32>
    %9 = vector.extract_strided_slice %6 {offsets = [1, 0, 0], sizes = [1, 1, 64], strides = [1, 1, 1]} : vector<4x1x64xf32> to vector<1x1x64xf32>
    %10 = vector.shape_cast %9 : vector<1x1x64xf32> to vector<1x64xf32>
    %cst = arith.constant dense<0.000000e+00> : vector<8xf32>
    %11 = vector.multi_reduction <add>, %3, %cst [1] : vector<8x64xf32> to vector<8xf32>
    %12 = vector.shape_cast %11 : vector<8xf32> to vector<8x1xf32>
    %cst_8 = arith.constant 6.400000e+01 : f32
    %13 = vector.broadcast %cst_8 : f32 to vector<8x1xf32>
    %14 = arith.divf %12, %13 : vector<8x1xf32>
    %15 = vector.broadcast %14 : vector<8x1xf32> to vector<8x64xf32>
    %16 = arith.subf %3, %15 : vector<8x64xf32>
    %17 = arith.mulf %16, %16 : vector<8x64xf32>
    %cst_9 = arith.constant dense<0.000000e+00> : vector<8xf32>
    %18 = vector.multi_reduction <add>, %17, %cst_9 [1] : vector<8x64xf32> to vector<8xf32>
    %19 = vector.shape_cast %18 : vector<8xf32> to vector<8x1xf32>
    %cst_10 = arith.constant 6.400000e+01 : f32
    %20 = vector.broadcast %cst_10 : f32 to vector<8x1xf32>
    %21 = arith.divf %19, %20 : vector<8x1xf32>
    %22 = vector.broadcast %14 : vector<8x1xf32> to vector<8x64xf32>
    %23 = arith.subf %3, %22 : vector<8x64xf32>
    %cst_11 = arith.constant 9.99999974E-6 : f32
    %24 = vector.broadcast %cst_11 : f32 to vector<8x1xf32>
    %25 = arith.addf %21, %24 : vector<8x1xf32>
    %26 = math.rsqrt %25 : vector<8x1xf32>
    %27 = vector.broadcast %26 : vector<8x1xf32> to vector<8x64xf32>
    %28 = arith.mulf %23, %27 : vector<8x64xf32>
    %29 = vector.broadcast %8 : vector<1x64xf32> to vector<8x64xf32>
    %30 = arith.mulf %28, %29 : vector<8x64xf32>
    %31 = vector.broadcast %10 : vector<1x64xf32> to vector<8x64xf32>
    %32 = arith.addf %30, %31 : vector<8x64xf32>
    %33 = arith.truncf %32 : vector<8x64xf32> to vector<8x64xbf16>
    %c0_12 = arith.constant 0 : index
    %c0_13 = arith.constant 0 : index
    %c0_14 = arith.constant 0 : index
    %34 = vector.load %arg4[%c0_12, %c0_13, %c0_14] : memref<1x64x192xbf16, #tpu.memory_space<vmem>>, vector<1x64x192xbf16>
    %35 = vector.shape_cast %34 : vector<1x64x192xbf16> to vector<64x192xbf16>
    %cst_15 = arith.constant dense<0.000000e+00> : vector<8x192xf32>
    %36 = tpu.matmul %33, %35, %cst_15 {dimension_numbers = #tpu.dot_dimension_numbers<[1], [0], [0], [1], [0, 0, 1, 1], [], []>} : vector<8x64xbf16>, vector<64x192xbf16>, vector<8x192xf32> -> vector<8x192xf32>
    %37 = arith.truncf %36 : vector<8x192xf32> to vector<8x192xbf16>
    %38 = vector.extract_strided_slice %37 {offsets = [0, 0], sizes = [8, 8], strides = [1, 1]} : vector<8x192xbf16> to vector<8x8xbf16>
    %39 = vector.extract_strided_slice %37 {offsets = [0, 64], sizes = [8, 8], strides = [1, 1]} : vector<8x192xbf16> to vector<8x8xbf16>
    %40 = vector.extract_strided_slice %37 {offsets = [0, 128], sizes = [8, 8], strides = [1, 1]} : vector<8x192xbf16> to vector<8x8xbf16>
    %41 = tpu.transpose %39, [1, 0] : vector<8x8xbf16> -> vector<8x8xbf16>
    %cst_16 = arith.constant dense<0.000000e+00> : vector<8x8xf32>
    %42 = tpu.matmul %38, %41, %cst_16 {dimension_numbers = #tpu.dot_dimension_numbers<[1], [0], [0], [1], [0, 0, 1, 1], [], []>} : vector<8x8xbf16>, vector<8x8xbf16>, vector<8x8xf32> -> vector<8x8xf32>
    %43 = arith.addf %42, %4 : vector<8x8xf32>
    %cst_17 = arith.constant dense<0xFF800000> : vector<8xf32>
    %44 = vector.multi_reduction <maximumf>, %43, %cst_17 [1] : vector<8x8xf32> to vector<8xf32>
    %45 = vector.shape_cast %44 : vector<8xf32> to vector<8x1xf32>
    %46 = vector.broadcast %45 : vector<8x1xf32> to vector<8x8xf32>
    %47 = arith.subf %43, %46 : vector<8x8xf32>
    %48 = math.exp %47 : vector<8x8xf32>
    %cst_18 = arith.constant dense<0.000000e+00> : vector<8xf32>
    %49 = vector.multi_reduction <add>, %48, %cst_18 [1] : vector<8x8xf32> to vector<8xf32>
    %50 = vector.shape_cast %49 : vector<8xf32> to vector<8x1xf32>
    %51 = tpu.reciprocal %50 {approx = true} : vector<8x1xf32> -> vector<8x1xf32>
    %52 = vector.broadcast %51 : vector<8x1xf32> to vector<8x8xf32>
    %53 = arith.mulf %48, %52 : vector<8x8xf32>
    %54 = arith.truncf %53 : vector<8x8xf32> to vector<8x8xbf16>
    %cst_19 = arith.constant dense<0.000000e+00> : vector<8x8xf32>
    %55 = tpu.matmul %54, %40, %cst_19 {dimension_numbers = #tpu.dot_dimension_numbers<[1], [0], [0], [1], [0, 0, 1, 1], [], []>} : vector<8x8xbf16>, vector<8x8xbf16>, vector<8x8xf32> -> vector<8x8xf32>
    %56 = arith.truncf %55 : vector<8x8xf32> to vector<8x8xbf16>
    %57 = vector.extract_strided_slice %37 {offsets = [0, 8], sizes = [8, 8], strides = [1, 1]} : vector<8x192xbf16> to vector<8x8xbf16>
    %58 = vector.extract_strided_slice %37 {offsets = [0, 72], sizes = [8, 8], strides = [1, 1]} : vector<8x192xbf16> to vector<8x8xbf16>
    %59 = vector.extract_strided_slice %37 {offsets = [0, 136], sizes = [8, 8], strides = [1, 1]} : vector<8x192xbf16> to vector<8x8xbf16>
    %60 = tpu.transpose %58, [1, 0] : vector<8x8xbf16> -> vector<8x8xbf16>
    %cst_20 = arith.constant dense<0.000000e+00> : vector<8x8xf32>
    %61 = tpu.matmul %57, %60, %cst_20 {dimension_numbers = #tpu.dot_dimension_numbers<[1], [0], [0], [1], [0, 0, 1, 1], [], []>} : vector<8x8xbf16>, vector<8x8xbf16>, vector<8x8xf32> -> vector<8x8xf32>
    %62 = arith.addf %61, %4 : vector<8x8xf32>
    %cst_21 = arith.constant dense<0xFF800000> : vector<8xf32>
    %63 = vector.multi_reduction <maximumf>, %62, %cst_21 [1] : vector<8x8xf32> to vector<8xf32>
    %64 = vector.shape_cast %63 : vector<8xf32> to vector<8x1xf32>
    %65 = vector.broadcast %64 : vector<8x1xf32> to vector<8x8xf32>
    %66 = arith.subf %62, %65 : vector<8x8xf32>
    %67 = math.exp %66 : vector<8x8xf32>
    %cst_22 = arith.constant dense<0.000000e+00> : vector<8xf32>
    %68 = vector.multi_reduction <add>, %67, %cst_22 [1] : vector<8x8xf32> to vector<8xf32>
    %69 = vector.shape_cast %68 : vector<8xf32> to vector<8x1xf32>
    %70 = tpu.reciprocal %69 {approx = true} : vector<8x1xf32> -> vector<8x1xf32>
    %71 = vector.broadcast %70 : vector<8x1xf32> to vector<8x8xf32>
    %72 = arith.mulf %67, %71 : vector<8x8xf32>
    %73 = arith.truncf %72 : vector<8x8xf32> to vector<8x8xbf16>
    %cst_23 = arith.constant dense<0.000000e+00> : vector<8x8xf32>
    %74 = tpu.matmul %73, %59, %cst_23 {dimension_numbers = #tpu.dot_dimension_numbers<[1], [0], [0], [1], [0, 0, 1, 1], [], []>} : vector<8x8xbf16>, vector<8x8xbf16>, vector<8x8xf32> -> vector<8x8xf32>
    %75 = arith.truncf %74 : vector<8x8xf32> to vector<8x8xbf16>
    %76 = vector.extract_strided_slice %37 {offsets = [0, 16], sizes = [8, 8], strides = [1, 1]} : vector<8x192xbf16> to vector<8x8xbf16>
    %77 = vector.extract_strided_slice %37 {offsets = [0, 80], sizes = [8, 8], strides = [1, 1]} : vector<8x192xbf16> to vector<8x8xbf16>
    %78 = vector.extract_strided_slice %37 {offsets = [0, 144], sizes = [8, 8], strides = [1, 1]} : vector<8x192xbf16> to vector<8x8xbf16>
    %79 = tpu.transpose %77, [1, 0] : vector<8x8xbf16> -> vector<8x8xbf16>
    %cst_24 = arith.constant dense<0.000000e+00> : vector<8x8xf32>
    %80 = tpu.matmul %76, %79, %cst_24 {dimension_numbers = #tpu.dot_dimension_numbers<[1], [0], [0], [1], [0, 0, 1, 1], [], []>} : vector<8x8xbf16>, vector<8x8xbf16>, vector<8x8xf32> -> vector<8x8xf32>
    %81 = arith.addf %80, %4 : vector<8x8xf32>
    %cst_25 = arith.constant dense<0xFF800000> : vector<8xf32>
    %82 = vector.multi_reduction <maximumf>, %81, %cst_25 [1] : vector<8x8xf32> to vector<8xf32>
    %83 = vector.shape_cast %82 : vector<8xf32> to vector<8x1xf32>
    %84 = vector.broadcast %83 : vector<8x1xf32> to vector<8x8xf32>
    %85 = arith.subf %81, %84 : vector<8x8xf32>
    %86 = math.exp %85 : vector<8x8xf32>
    %cst_26 = arith.constant dense<0.000000e+00> : vector<8xf32>
    %87 = vector.multi_reduction <add>, %86, %cst_26 [1] : vector<8x8xf32> to vector<8xf32>
    %88 = vector.shape_cast %87 : vector<8xf32> to vector<8x1xf32>
    %89 = tpu.reciprocal %88 {approx = true} : vector<8x1xf32> -> vector<8x1xf32>
    %90 = vector.broadcast %89 : vector<8x1xf32> to vector<8x8xf32>
    %91 = arith.mulf %86, %90 : vector<8x8xf32>
    %92 = arith.truncf %91 : vector<8x8xf32> to vector<8x8xbf16>
    %cst_27 = arith.constant dense<0.000000e+00> : vector<8x8xf32>
    %93 = tpu.matmul %92, %78, %cst_27 {dimension_numbers = #tpu.dot_dimension_numbers<[1], [0], [0], [1], [0, 0, 1, 1], [], []>} : vector<8x8xbf16>, vector<8x8xbf16>, vector<8x8xf32> -> vector<8x8xf32>
    %94 = arith.truncf %93 : vector<8x8xf32> to vector<8x8xbf16>
    %95 = vector.extract_strided_slice %37 {offsets = [0, 24], sizes = [8, 8], strides = [1, 1]} : vector<8x192xbf16> to vector<8x8xbf16>
    %96 = vector.extract_strided_slice %37 {offsets = [0, 88], sizes = [8, 8], strides = [1, 1]} : vector<8x192xbf16> to vector<8x8xbf16>
    %97 = vector.extract_strided_slice %37 {offsets = [0, 152], sizes = [8, 8], strides = [1, 1]} : vector<8x192xbf16> to vector<8x8xbf16>
    %98 = tpu.transpose %96, [1, 0] : vector<8x8xbf16> -> vector<8x8xbf16>
    %cst_28 = arith.constant dense<0.000000e+00> : vector<8x8xf32>
    %99 = tpu.matmul %95, %98, %cst_28 {dimension_numbers = #tpu.dot_dimension_numbers<[1], [0], [0], [1], [0, 0, 1, 1], [], []>} : vector<8x8xbf16>, vector<8x8xbf16>, vector<8x8xf32> -> vector<8x8xf32>
    %100 = arith.addf %99, %4 : vector<8x8xf32>
    %cst_29 = arith.constant dense<0xFF800000> : vector<8xf32>
    %101 = vector.multi_reduction <maximumf>, %100, %cst_29 [1] : vector<8x8xf32> to vector<8xf32>
    %102 = vector.shape_cast %101 : vector<8xf32> to vector<8x1xf32>
    %103 = vector.broadcast %102 : vector<8x1xf32> to vector<8x8xf32>
    %104 = arith.subf %100, %103 : vector<8x8xf32>
    %105 = math.exp %104 : vector<8x8xf32>
    %cst_30 = arith.constant dense<0.000000e+00> : vector<8xf32>
    %106 = vector.multi_reduction <add>, %105, %cst_30 [1] : vector<8x8xf32> to vector<8xf32>
    %107 = vector.shape_cast %106 : vector<8xf32> to vector<8x1xf32>
    %108 = tpu.reciprocal %107 {approx = true} : vector<8x1xf32> -> vector<8x1xf32>
    %109 = vector.broadcast %108 : vector<8x1xf32> to vector<8x8xf32>
    %110 = arith.mulf %105, %109 : vector<8x8xf32>
    %111 = arith.truncf %110 : vector<8x8xf32> to vector<8x8xbf16>
    %cst_31 = arith.constant dense<0.000000e+00> : vector<8x8xf32>
    %112 = tpu.matmul %111, %97, %cst_31 {dimension_numbers = #tpu.dot_dimension_numbers<[1], [0], [0], [1], [0, 0, 1, 1], [], []>} : vector<8x8xbf16>, vector<8x8xbf16>, vector<8x8xf32> -> vector<8x8xf32>
    %113 = arith.truncf %112 : vector<8x8xf32> to vector<8x8xbf16>
    %114 = vector.extract_strided_slice %37 {offsets = [0, 32], sizes = [8, 8], strides = [1, 1]} : vector<8x192xbf16> to vector<8x8xbf16>
    %115 = vector.extract_strided_slice %37 {offsets = [0, 96], sizes = [8, 8], strides = [1, 1]} : vector<8x192xbf16> to vector<8x8xbf16>
    %116 = vector.extract_strided_slice %37 {offsets = [0, 160], sizes = [8, 8], strides = [1, 1]} : vector<8x192xbf16> to vector<8x8xbf16>
    %117 = tpu.transpose %115, [1, 0] : vector<8x8xbf16> -> vector<8x8xbf16>
    %cst_32 = arith.constant dense<0.000000e+00> : vector<8x8xf32>
    %118 = tpu.matmul %114, %117, %cst_32 {dimension_numbers = #tpu.dot_dimension_numbers<[1], [0], [0], [1], [0, 0, 1, 1], [], []>} : vector<8x8xbf16>, vector<8x8xbf16>, vector<8x8xf32> -> vector<8x8xf32>
    %119 = arith.addf %118, %4 : vector<8x8xf32>
    %cst_33 = arith.constant dense<0xFF800000> : vector<8xf32>
    %120 = vector.multi_reduction <maximumf>, %119, %cst_33 [1] : vector<8x8xf32> to vector<8xf32>
    %121 = vector.shape_cast %120 : vector<8xf32> to vector<8x1xf32>
    %122 = vector.broadcast %121 : vector<8x1xf32> to vector<8x8xf32>
    %123 = arith.subf %119, %122 : vector<8x8xf32>
    %124 = math.exp %123 : vector<8x8xf32>
    %cst_34 = arith.constant dense<0.000000e+00> : vector<8xf32>
    %125 = vector.multi_reduction <add>, %124, %cst_34 [1] : vector<8x8xf32> to vector<8xf32>
    %126 = vector.shape_cast %125 : vector<8xf32> to vector<8x1xf32>
    %127 = tpu.reciprocal %126 {approx = true} : vector<8x1xf32> -> vector<8x1xf32>
    %128 = vector.broadcast %127 : vector<8x1xf32> to vector<8x8xf32>
    %129 = arith.mulf %124, %128 : vector<8x8xf32>
    %130 = arith.truncf %129 : vector<8x8xf32> to vector<8x8xbf16>
    %cst_35 = arith.constant dense<0.000000e+00> : vector<8x8xf32>
    %131 = tpu.matmul %130, %116, %cst_35 {dimension_numbers = #tpu.dot_dimension_numbers<[1], [0], [0], [1], [0, 0, 1, 1], [], []>} : vector<8x8xbf16>, vector<8x8xbf16>, vector<8x8xf32> -> vector<8x8xf32>
    %132 = arith.truncf %131 : vector<8x8xf32> to vector<8x8xbf16>
    %133 = vector.extract_strided_slice %37 {offsets = [0, 40], sizes = [8, 8], strides = [1, 1]} : vector<8x192xbf16> to vector<8x8xbf16>
    %134 = vector.extract_strided_slice %37 {offsets = [0, 104], sizes = [8, 8], strides = [1, 1]} : vector<8x192xbf16> to vector<8x8xbf16>
    %135 = vector.extract_strided_slice %37 {offsets = [0, 168], sizes = [8, 8], strides = [1, 1]} : vector<8x192xbf16> to vector<8x8xbf16>
    %136 = tpu.transpose %134, [1, 0] : vector<8x8xbf16> -> vector<8x8xbf16>
    %cst_36 = arith.constant dense<0.000000e+00> : vector<8x8xf32>
    %137 = tpu.matmul %133, %136, %cst_36 {dimension_numbers = #tpu.dot_dimension_numbers<[1], [0], [0], [1], [0, 0, 1, 1], [], []>} : vector<8x8xbf16>, vector<8x8xbf16>, vector<8x8xf32> -> vector<8x8xf32>
    %138 = arith.addf %137, %4 : vector<8x8xf32>
    %cst_37 = arith.constant dense<0xFF800000> : vector<8xf32>
    %139 = vector.multi_reduction <maximumf>, %138, %cst_37 [1] : vector<8x8xf32> to vector<8xf32>
    %140 = vector.shape_cast %139 : vector<8xf32> to vector<8x1xf32>
    %141 = vector.broadcast %140 : vector<8x1xf32> to vector<8x8xf32>
    %142 = arith.subf %138, %141 : vector<8x8xf32>
    %143 = math.exp %142 : vector<8x8xf32>
    %cst_38 = arith.constant dense<0.000000e+00> : vector<8xf32>
    %144 = vector.multi_reduction <add>, %143, %cst_38 [1] : vector<8x8xf32> to vector<8xf32>
    %145 = vector.shape_cast %144 : vector<8xf32> to vector<8x1xf32>
    %146 = tpu.reciprocal %145 {approx = true} : vector<8x1xf32> -> vector<8x1xf32>
    %147 = vector.broadcast %146 : vector<8x1xf32> to vector<8x8xf32>
    %148 = arith.mulf %143, %147 : vector<8x8xf32>
    %149 = arith.truncf %148 : vector<8x8xf32> to vector<8x8xbf16>
    %cst_39 = arith.constant dense<0.000000e+00> : vector<8x8xf32>
    %150 = tpu.matmul %149, %135, %cst_39 {dimension_numbers = #tpu.dot_dimension_numbers<[1], [0], [0], [1], [0, 0, 1, 1], [], []>} : vector<8x8xbf16>, vector<8x8xbf16>, vector<8x8xf32> -> vector<8x8xf32>
    %151 = arith.truncf %150 : vector<8x8xf32> to vector<8x8xbf16>
    %152 = vector.extract_strided_slice %37 {offsets = [0, 48], sizes = [8, 8], strides = [1, 1]} : vector<8x192xbf16> to vector<8x8xbf16>
    %153 = vector.extract_strided_slice %37 {offsets = [0, 112], sizes = [8, 8], strides = [1, 1]} : vector<8x192xbf16> to vector<8x8xbf16>
    %154 = vector.extract_strided_slice %37 {offsets = [0, 176], sizes = [8, 8], strides = [1, 1]} : vector<8x192xbf16> to vector<8x8xbf16>
    %155 = tpu.transpose %153, [1, 0] : vector<8x8xbf16> -> vector<8x8xbf16>
    %cst_40 = arith.constant dense<0.000000e+00> : vector<8x8xf32>
    %156 = tpu.matmul %152, %155, %cst_40 {dimension_numbers = #tpu.dot_dimension_numbers<[1], [0], [0], [1], [0, 0, 1, 1], [], []>} : vector<8x8xbf16>, vector<8x8xbf16>, vector<8x8xf32> -> vector<8x8xf32>
    %157 = arith.addf %156, %4 : vector<8x8xf32>
    %cst_41 = arith.constant dense<0xFF800000> : vector<8xf32>
    %158 = vector.multi_reduction <maximumf>, %157, %cst_41 [1] : vector<8x8xf32> to vector<8xf32>
    %159 = vector.shape_cast %158 : vector<8xf32> to vector<8x1xf32>
    %160 = vector.broadcast %159 : vector<8x1xf32> to vector<8x8xf32>
    %161 = arith.subf %157, %160 : vector<8x8xf32>
    %162 = math.exp %161 : vector<8x8xf32>
    %cst_42 = arith.constant dense<0.000000e+00> : vector<8xf32>
    %163 = vector.multi_reduction <add>, %162, %cst_42 [1] : vector<8x8xf32> to vector<8xf32>
    %164 = vector.shape_cast %163 : vector<8xf32> to vector<8x1xf32>
    %165 = tpu.reciprocal %164 {approx = true} : vector<8x1xf32> -> vector<8x1xf32>
    %166 = vector.broadcast %165 : vector<8x1xf32> to vector<8x8xf32>
    %167 = arith.mulf %162, %166 : vector<8x8xf32>
    %168 = arith.truncf %167 : vector<8x8xf32> to vector<8x8xbf16>
    %cst_43 = arith.constant dense<0.000000e+00> : vector<8x8xf32>
    %169 = tpu.matmul %168, %154, %cst_43 {dimension_numbers = #tpu.dot_dimension_numbers<[1], [0], [0], [1], [0, 0, 1, 1], [], []>} : vector<8x8xbf16>, vector<8x8xbf16>, vector<8x8xf32> -> vector<8x8xf32>
    %170 = arith.truncf %169 : vector<8x8xf32> to vector<8x8xbf16>
    %171 = vector.extract_strided_slice %37 {offsets = [0, 56], sizes = [8, 8], strides = [1, 1]} : vector<8x192xbf16> to vector<8x8xbf16>
    %172 = vector.extract_strided_slice %37 {offsets = [0, 120], sizes = [8, 8], strides = [1, 1]} : vector<8x192xbf16> to vector<8x8xbf16>
    %173 = vector.extract_strided_slice %37 {offsets = [0, 184], sizes = [8, 8], strides = [1, 1]} : vector<8x192xbf16> to vector<8x8xbf16>
    %174 = tpu.transpose %172, [1, 0] : vector<8x8xbf16> -> vector<8x8xbf16>
    %cst_44 = arith.constant dense<0.000000e+00> : vector<8x8xf32>
    %175 = tpu.matmul %171, %174, %cst_44 {dimension_numbers = #tpu.dot_dimension_numbers<[1], [0], [0], [1], [0, 0, 1, 1], [], []>} : vector<8x8xbf16>, vector<8x8xbf16>, vector<8x8xf32> -> vector<8x8xf32>
    %176 = arith.addf %175, %4 : vector<8x8xf32>
    %cst_45 = arith.constant dense<0xFF800000> : vector<8xf32>
    %177 = vector.multi_reduction <maximumf>, %176, %cst_45 [1] : vector<8x8xf32> to vector<8xf32>
    %178 = vector.shape_cast %177 : vector<8xf32> to vector<8x1xf32>
    %179 = vector.broadcast %178 : vector<8x1xf32> to vector<8x8xf32>
    %180 = arith.subf %176, %179 : vector<8x8xf32>
    %181 = math.exp %180 : vector<8x8xf32>
    %cst_46 = arith.constant dense<0.000000e+00> : vector<8xf32>
    %182 = vector.multi_reduction <add>, %181, %cst_46 [1] : vector<8x8xf32> to vector<8xf32>
    %183 = vector.shape_cast %182 : vector<8xf32> to vector<8x1xf32>
    %184 = tpu.reciprocal %183 {approx = true} : vector<8x1xf32> -> vector<8x1xf32>
    %185 = vector.broadcast %184 : vector<8x1xf32> to vector<8x8xf32>
    %186 = arith.mulf %181, %185 : vector<8x8xf32>
    %187 = arith.truncf %186 : vector<8x8xf32> to vector<8x8xbf16>
    %cst_47 = arith.constant dense<0.000000e+00> : vector<8x8xf32>
    %188 = tpu.matmul %187, %173, %cst_47 {dimension_numbers = #tpu.dot_dimension_numbers<[1], [0], [0], [1], [0, 0, 1, 1], [], []>} : vector<8x8xbf16>, vector<8x8xbf16>, vector<8x8xf32> -> vector<8x8xf32>
    %189 = arith.truncf %188 : vector<8x8xf32> to vector<8x8xbf16>
    %190 = tpu.concatenate %56, %75, %94, %113, %132, %151, %170, %189 in 1 : vector<8x8xbf16>, vector<8x8xbf16>, vector<8x8xbf16>, vector<8x8xbf16>, vector<8x8xbf16>, vector<8x8xbf16>, vector<8x8xbf16>, vector<8x8xbf16> -> vector<8x64xbf16>
    %c0_48 = arith.constant 0 : index
    %c0_49 = arith.constant 0 : index
    %c0_50 = arith.constant 0 : index
    %191 = vector.load %arg5[%c0_48, %c0_49, %c0_50] : memref<1x64x64xbf16, #tpu.memory_space<vmem>>, vector<1x64x64xbf16>
    %192 = vector.shape_cast %191 : vector<1x64x64xbf16> to vector<64x64xbf16>
    %cst_51 = arith.constant dense<0.000000e+00> : vector<8x64xf32>
    %193 = tpu.matmul %190, %192, %cst_51 {dimension_numbers = #tpu.dot_dimension_numbers<[1], [0], [0], [1], [0, 0, 1, 1], [], []>} : vector<8x64xbf16>, vector<64x64xbf16>, vector<8x64xf32> -> vector<8x64xf32>
    %194 = arith.addf %3, %193 : vector<8x64xf32>
    %c0_52 = arith.constant 0 : index
    %c0_53 = arith.constant 0 : index
    %c0_54 = arith.constant 0 : index
    %195 = vector.load %arg6[%c0_52, %c0_53, %c0_54] : memref<1x1x64xf32, #tpu.memory_space<vmem>>, vector<1x1x64xf32>
    %196 = vector.shape_cast %195 : vector<1x1x64xf32> to vector<1x64xf32>
    %197 = vector.broadcast %196 : vector<1x64xf32> to vector<8x64xf32>
    %198 = arith.addf %194, %197 : vector<8x64xf32>
    %199 = vector.extract_strided_slice %6 {offsets = [2, 0, 0], sizes = [1, 1, 64], strides = [1, 1, 1]} : vector<4x1x64xf32> to vector<1x1x64xf32>
    %200 = vector.shape_cast %199 : vector<1x1x64xf32> to vector<1x64xf32>
    %201 = vector.extract_strided_slice %6 {offsets = [3, 0, 0], sizes = [1, 1, 64], strides = [1, 1, 1]} : vector<4x1x64xf32> to vector<1x1x64xf32>
    %202 = vector.shape_cast %201 : vector<1x1x64xf32> to vector<1x64xf32>
    %cst_55 = arith.constant dense<0.000000e+00> : vector<8xf32>
    %203 = vector.multi_reduction <add>, %198, %cst_55 [1] : vector<8x64xf32> to vector<8xf32>
    %204 = vector.shape_cast %203 : vector<8xf32> to vector<8x1xf32>
    %cst_56 = arith.constant 6.400000e+01 : f32
    %205 = vector.broadcast %cst_56 : f32 to vector<8x1xf32>
    %206 = arith.divf %204, %205 : vector<8x1xf32>
    %207 = vector.broadcast %206 : vector<8x1xf32> to vector<8x64xf32>
    %208 = arith.subf %198, %207 : vector<8x64xf32>
    %209 = arith.mulf %208, %208 : vector<8x64xf32>
    %cst_57 = arith.constant dense<0.000000e+00> : vector<8xf32>
    %210 = vector.multi_reduction <add>, %209, %cst_57 [1] : vector<8x64xf32> to vector<8xf32>
    %211 = vector.shape_cast %210 : vector<8xf32> to vector<8x1xf32>
    %cst_58 = arith.constant 6.400000e+01 : f32
    %212 = vector.broadcast %cst_58 : f32 to vector<8x1xf32>
    %213 = arith.divf %211, %212 : vector<8x1xf32>
    %214 = vector.broadcast %206 : vector<8x1xf32> to vector<8x64xf32>
    %215 = arith.subf %198, %214 : vector<8x64xf32>
    %cst_59 = arith.constant 9.99999974E-6 : f32
    %216 = vector.broadcast %cst_59 : f32 to vector<8x1xf32>
    %217 = arith.addf %213, %216 : vector<8x1xf32>
    %218 = math.rsqrt %217 : vector<8x1xf32>
    %219 = vector.broadcast %218 : vector<8x1xf32> to vector<8x64xf32>
    %220 = arith.mulf %215, %219 : vector<8x64xf32>
    %221 = vector.broadcast %200 : vector<1x64xf32> to vector<8x64xf32>
    %222 = arith.mulf %220, %221 : vector<8x64xf32>
    %223 = vector.broadcast %202 : vector<1x64xf32> to vector<8x64xf32>
    %224 = arith.addf %222, %223 : vector<8x64xf32>
    %225 = arith.truncf %224 : vector<8x64xf32> to vector<8x64xbf16>
    %c0_60 = arith.constant 0 : index
    %c0_61 = arith.constant 0 : index
    %c0_62 = arith.constant 0 : index
    %226 = vector.load %arg7[%c0_60, %c0_61, %c0_62] : memref<1x64x256xbf16, #tpu.memory_space<vmem>>, vector<1x64x256xbf16>
    %227 = vector.shape_cast %226 : vector<1x64x256xbf16> to vector<64x256xbf16>
    %cst_63 = arith.constant dense<0.000000e+00> : vector<8x256xf32>
    %228 = tpu.matmul %225, %227, %cst_63 {dimension_numbers = #tpu.dot_dimension_numbers<[1], [0], [0], [1], [0, 0, 1, 1], [], []>} : vector<8x64xbf16>, vector<64x256xbf16>, vector<8x256xf32> -> vector<8x256xf32>
    %c0_64 = arith.constant 0 : index
    %c0_65 = arith.constant 0 : index
    %c0_66 = arith.constant 0 : index
    %229 = vector.load %arg8[%c0_64, %c0_65, %c0_66] : memref<1x1x256xf32, #tpu.memory_space<vmem>>, vector<1x1x256xf32>
    %230 = vector.shape_cast %229 : vector<1x1x256xf32> to vector<1x256xf32>
    %231 = vector.broadcast %230 : vector<1x256xf32> to vector<8x256xf32>
    %232 = arith.addf %228, %231 : vector<8x256xf32>
    %cst_67 = arith.constant 0.000000e+00 : f32
    %233 = vector.broadcast %cst_67 : f32 to vector<8x256xf32>
    %234 = arith.maximumf %232, %233 : vector<8x256xf32>
    %235 = arith.truncf %234 : vector<8x256xf32> to vector<8x256xbf16>
    %c0_68 = arith.constant 0 : index
    %c0_69 = arith.constant 0 : index
    %c0_70 = arith.constant 0 : index
    %236 = vector.load %arg9[%c0_68, %c0_69, %c0_70] : memref<1x256x64xbf16, #tpu.memory_space<vmem>>, vector<1x256x64xbf16>
    %237 = vector.shape_cast %236 : vector<1x256x64xbf16> to vector<256x64xbf16>
    %cst_71 = arith.constant dense<0.000000e+00> : vector<8x64xf32>
    %238 = tpu.matmul %235, %237, %cst_71 {dimension_numbers = #tpu.dot_dimension_numbers<[1], [0], [0], [1], [0, 0, 1, 1], [], []>} : vector<8x256xbf16>, vector<256x64xbf16>, vector<8x64xf32> -> vector<8x64xf32>
    %239 = arith.addf %198, %238 : vector<8x64xf32>
    %c0_72 = arith.constant 0 : index
    %c0_73 = arith.constant 0 : index
    %c0_74 = arith.constant 0 : index
    %240 = vector.load %arg10[%c0_72, %c0_73, %c0_74] : memref<1x1x64xf32, #tpu.memory_space<vmem>>, vector<1x1x64xf32>
    %241 = vector.shape_cast %240 : vector<1x1x64xf32> to vector<1x64xf32>
    %242 = vector.broadcast %241 : vector<1x64xf32> to vector<8x64xf32>
    %243 = arith.addf %239, %242 : vector<8x64xf32>
    %c0_75 = arith.constant 0 : index
    %c0_76 = arith.constant 0 : index
    %244 = vector.load %arg15[%c0_75, %c0_76] : memref<8x64xf32, #tpu.memory_space<vmem>>, vector<8x64xf32>
    tpu.vector_store %arg15[%c0_75, %c0_76], %243 {strides = array<i32>} : memref<8x64xf32, #tpu.memory_space<vmem>>, vector<8x64xf32>,
    %c5_i32 = arith.constant 5 : i32
    %245 = arith.cmpi eq, %arg1, %c5_i32 : i32
    %246 = arith.extui %245 : i1 to i32
    %c0_i32_77 = arith.constant 0 : i32
    %247 = arith.cmpi ne, %246, %c0_i32_77 : i32
    scf.if %247 {
      %c0_78 = arith.constant 0 : index
      %c0_79 = arith.constant 0 : index
      %c0_80 = arith.constant 0 : index
      %248 = vector.load %arg11[%c0_78, %c0_79, %c0_80] : memref<2x1x64xf32, #tpu.memory_space<vmem>>, vector<1x1x64xf32>
      %249 = vector.shape_cast %248 : vector<1x1x64xf32> to vector<1x64xf32>
      %c1 = arith.constant 1 : index
      %c0_81 = arith.constant 0 : index
      %c0_82 = arith.constant 0 : index
      %250 = vector.load %arg11[%c1, %c0_81, %c0_82] : memref<2x1x64xf32, #tpu.memory_space<vmem>>, vector<1x1x64xf32>
      %251 = vector.shape_cast %250 : vector<1x1x64xf32> to vector<1x64xf32>
      %cst_83 = arith.constant dense<0.000000e+00> : vector<8xf32>
      %252 = vector.multi_reduction <add>, %243, %cst_83 [1] : vector<8x64xf32> to vector<8xf32>
      %253 = vector.shape_cast %252 : vector<8xf32> to vector<8x1xf32>
      %cst_84 = arith.constant 6.400000e+01 : f32
      %254 = vector.broadcast %cst_84 : f32 to vector<8x1xf32>
      %255 = arith.divf %253, %254 : vector<8x1xf32>
      %256 = vector.broadcast %255 : vector<8x1xf32> to vector<8x64xf32>
      %257 = arith.subf %243, %256 : vector<8x64xf32>
      %258 = arith.mulf %257, %257 : vector<8x64xf32>
      %cst_85 = arith.constant dense<0.000000e+00> : vector<8xf32>
      %259 = vector.multi_reduction <add>, %258, %cst_85 [1] : vector<8x64xf32> to vector<8xf32>
      %260 = vector.shape_cast %259 : vector<8xf32> to vector<8x1xf32>
      %cst_86 = arith.constant 6.400000e+01 : f32
      %261 = vector.broadcast %cst_86 : f32 to vector<8x1xf32>
      %262 = arith.divf %260, %261 : vector<8x1xf32>
      %263 = vector.broadcast %255 : vector<8x1xf32> to vector<8x64xf32>
      %264 = arith.subf %243, %263 : vector<8x64xf32>
      %cst_87 = arith.constant 9.99999974E-6 : f32
      %265 = vector.broadcast %cst_87 : f32 to vector<8x1xf32>
      %266 = arith.addf %262, %265 : vector<8x1xf32>
      %267 = math.rsqrt %266 : vector<8x1xf32>
      %268 = vector.broadcast %267 : vector<8x1xf32> to vector<8x64xf32>
      %269 = arith.mulf %264, %268 : vector<8x64xf32>
      %270 = vector.broadcast %249 : vector<1x64xf32> to vector<8x64xf32>
      %271 = arith.mulf %269, %270 : vector<8x64xf32>
      %272 = vector.broadcast %251 : vector<1x64xf32> to vector<8x64xf32>
      %273 = arith.addf %271, %272 : vector<8x64xf32>
      %274 = arith.truncf %273 : vector<8x64xf32> to vector<8x64xbf16>
      %c0_88 = arith.constant 0 : index
      %c0_89 = arith.constant 0 : index
      %275 = vector.load %arg12[%c0_88, %c0_89] : memref<64x128xbf16, #tpu.memory_space<vmem>>, vector<64x128xbf16>
      %cst_90 = arith.constant dense<0.000000e+00> : vector<8x128xf32>
      %276 = tpu.matmul %274, %275, %cst_90 {dimension_numbers = #tpu.dot_dimension_numbers<[1], [0], [0], [1], [0, 0, 1, 1], [], []>} : vector<8x64xbf16>, vector<64x128xbf16>, vector<8x128xf32> -> vector<8x128xf32>
      %c0_91 = arith.constant 0 : index
      %c0_92 = arith.constant 0 : index
      %277 = vector.load %arg13[%c0_91, %c0_92] : memref<1x128xf32, #tpu.memory_space<vmem>>, vector<1x128xf32>
      %278 = vector.broadcast %277 : vector<1x128xf32> to vector<8x128xf32>
      %279 = arith.addf %276, %278 : vector<8x128xf32>
      %c0_93 = arith.constant 0 : index
      %c0_94 = arith.constant 0 : index
      %c0_95 = arith.constant 0 : index
      %280 = vector.load %arg14[%c0_93, %c0_94, %c0_95] : memref<1x8x128xf32, #tpu.memory_space<vmem>>, vector<1x8x128xf32>
      %281 = vector.shape_cast %280 : vector<1x8x128xf32> to vector<8x128xf32>
      %282 = vector.shape_cast %279 : vector<8x128xf32> to vector<1x8x128xf32>
      tpu.vector_store %arg14[%c0_93, %c0_94, %c0_95], %282 {strides = array<i32>} : memref<1x8x128xf32, #tpu.memory_space<vmem>>, vector<1x8x128xf32>,
    } else {
    }
    return
  }
  func.func @transform_0(%arg0: i32, %arg1: i32) -> (i32, i32, i32) {
    %c0_i32 = arith.constant 0 : i32
    %c0_i32_0 = arith.constant 0 : i32
    %c0_i32_1 = arith.constant 0 : i32
    return %arg0, %c0_i32, %c0_i32_0 : i32, i32, i32
  }
  func.func @transform_1(%arg0: i32, %arg1: i32) -> (i32, i32, i32, i32) {
    %c0_i32 = arith.constant 0 : i32
    %c0_i32_0 = arith.constant 0 : i32
    %c0_i32_1 = arith.constant 0 : i32
    %c0_i32_2 = arith.constant 0 : i32
    return %arg1, %c0_i32, %c0_i32_0, %c0_i32_1 : i32, i32, i32, i32
  }
  func.func @transform_2(%arg0: i32, %arg1: i32) -> (i32, i32, i32) {
    %c0_i32 = arith.constant 0 : i32
    %c0_i32_0 = arith.constant 0 : i32
    %c0_i32_1 = arith.constant 0 : i32
    return %arg1, %c0_i32, %c0_i32_0 : i32, i32, i32
  }
  func.func @transform_3(%arg0: i32, %arg1: i32) -> (i32, i32, i32) {
    %c0_i32 = arith.constant 0 : i32
    %c0_i32_0 = arith.constant 0 : i32
    %c0_i32_1 = arith.constant 0 : i32
    return %arg1, %c0_i32, %c0_i32_0 : i32, i32, i32
  }
  func.func @transform_4(%arg0: i32, %arg1: i32) -> (i32, i32, i32) {
    %c0_i32 = arith.constant 0 : i32
    %c0_i32_0 = arith.constant 0 : i32
    %c0_i32_1 = arith.constant 0 : i32
    return %arg1, %c0_i32, %c0_i32_0 : i32, i32, i32
  }
  func.func @transform_5(%arg0: i32, %arg1: i32) -> (i32, i32, i32) {
    %c0_i32 = arith.constant 0 : i32
    %c0_i32_0 = arith.constant 0 : i32
    %c0_i32_1 = arith.constant 0 : i32
    return %arg1, %c0_i32, %c0_i32_0 : i32, i32, i32
  }
  func.func @transform_6(%arg0: i32, %arg1: i32) -> (i32, i32, i32) {
    %c0_i32 = arith.constant 0 : i32
    %c0_i32_0 = arith.constant 0 : i32
    %c0_i32_1 = arith.constant 0 : i32
    return %arg1, %c0_i32, %c0_i32_0 : i32, i32, i32
  }
  func.func @transform_7(%arg0: i32, %arg1: i32) -> (i32, i32, i32) {
    %c0_i32 = arith.constant 0 : i32
    %c0_i32_0 = arith.constant 0 : i32
    %c0_i32_1 = arith.constant 0 : i32
    return %arg1, %c0_i32, %c0_i32_0 : i32, i32, i32
  }
  func.func @transform_8(%arg0: i32, %arg1: i32) -> (i32, i32, i32) {
    %c0_i32 = arith.constant 0 : i32
    %c0_i32_0 = arith.constant 0 : i32
    %c0_i32_1 = arith.constant 0 : i32
    return %arg1, %c0_i32, %c0_i32_0 : i32, i32, i32
  }
  func.func @transform_9(%arg0: i32, %arg1: i32) -> (i32, i32, i32) {
    %c0_i32 = arith.constant 0 : i32
    %c0_i32_0 = arith.constant 0 : i32
    %c0_i32_1 = arith.constant 0 : i32
    %c0_i32_2 = arith.constant 0 : i32
    return %c0_i32, %c0_i32_0, %c0_i32_1 : i32, i32, i32
  }
  func.func @transform_10(%arg0: i32, %arg1: i32) -> (i32, i32) {
    %c0_i32 = arith.constant 0 : i32
    %c0_i32_0 = arith.constant 0 : i32
    %c0_i32_1 = arith.constant 0 : i32
    return %c0_i32, %c0_i32_0 : i32, i32
  }
  func.func @transform_11(%arg0: i32, %arg1: i32) -> (i32, i32) {
    %c0_i32 = arith.constant 0 : i32
    %c0_i32_0 = arith.constant 0 : i32
    %c0_i32_1 = arith.constant 0 : i32
    return %c0_i32, %c0_i32_0 : i32, i32
  }
  func.func @transform_12(%arg0: i32, %arg1: i32) -> (i32, i32, i32) {
    %c0_i32 = arith.constant 0 : i32
    %c0_i32_0 = arith.constant 0 : i32
    %c0_i32_1 = arith.constant 0 : i32
    return %arg0, %c0_i32, %c0_i32_0 : i32, i32, i32
  }
}

</mosaic_0001>

<llo_original>
// kernel: transformer_forward.1
$region0: #{transformer_forward.1}
  #allocation0 [shape = 'u32[]', space=smem, size = 0x4, offset = 0x4, fixed_abs, tag = 'smem constant byte address 0x4 - core index']
  #allocation1 [shape = 'u32[144,128]{1,0:T(1,128)}', space=vmem, size = 0x12000, scoped, tag = 'internal scratch']
  #allocation2 [shape = 'f32[8,64]{1,0:T(8,128)}', space=vmem, size = 0x1000, scoped, tag = 'scratch operand']
  #allocation3 [shape = 'f32[8,8]{1,0:T(8,128)}', space=vmem, size = 0x1000, scoped, tag = 'scratch operand']
  %s0 = inlined_call_operand.vmem [shape: f32[2,8,64], index: 0, kind: input, shape index: {}]
  %s1 = inlined_call_operand.vmem [shape: f32[6,4,1,64], index: 1, kind: input, shape index: {}]
  %s2 = inlined_call_operand.vmem [shape: bf16[6,64,192], index: 2, kind: input, shape index: {}]
  %s3 = inlined_call_operand.vmem [shape: bf16[6,64,64], index: 3, kind: input, shape index: {}]
  %s4 = inlined_call_operand.vmem [shape: f32[6,1,64], index: 4, kind: input, shape index: {}]
  %s5 = inlined_call_operand.vmem [shape: bf16[6,64,256], index: 5, kind: input, shape index: {}]
  %s6 = inlined_call_operand.vmem [shape: f32[6,1,256], index: 6, kind: input, shape index: {}]
  %s7 = inlined_call_operand.vmem [shape: bf16[6,256,64], index: 7, kind: input, shape index: {}]
  %s8 = inlined_call_operand.vmem [shape: f32[6,1,64], index: 8, kind: input, shape index: {}]
  %s9 = inlined_call_operand.vmem [shape: f32[2,1,64], index: 9, kind: input, shape index: {}]
  %s10 = inlined_call_operand.vmem [shape: bf16[64,128], index: 10, kind: input, shape index: {}]
  %s11 = inlined_call_operand.vmem [shape: f32[1,128], index: 11, kind: input, shape index: {}]
  %s12 = inlined_call_operand.hbm [shape: f32[2,8,128], index: 12, kind: output, shape index: {}]
  %s13 = sld [smem:[#allocation0]]
  $region89: #{transformer_forward.1} parent=0
    _
  %s15 = ssub.s32 1, %s13
  %s16 = scalar_select 0, %s15, %s13
  $region1: #{transformer_forward.1} parent=0
    #allocation4 [shape = 'u8[8192]{0}', space=vmem, size = 0x2000, scoped, tag = 'output window, operand 0']
    #allocation5 [shape = 's32[2]{0}', space=sflag, size = 0x8, scoped, tag = 'scoped memory for transformer_forward.1']
    %17 = vsyncpa [#allocation5], 0
    %s18 = scalar_lea.sflag [#allocation5], 1
    %19 = vsyncpa %s18, 0
    loop: start=0, step=1, limit=14
    $region2: #{transformer_forward.1} parent=1 // loop_pre_header
      _
    $region3: #{transformer_forward.1} parent=1 // loop_header
      %s21 = sphi 0, %s25
      %p22 = scmp.ge.s32.totalorder %s21, 14
      %s28 = sphi 0, %s40
      %s29 = sphi 0, %s36
      %s30 = sphi 0, %s28
      %s31 = sphi 0, %s29
      %s32 = sphi 0, %s30
      %s33 = sphi 0, %s31
      %s43 = sphi 0, %s45
      %s46 = sphi 0, %s43
      %s47 = sphi 0, %s46
      %s63 = sphi 0, %s47
      %s69 = sphi 0, %s71
      %s72 = sphi 0, %s69
      %s73 = sphi 0, %s72
      %s89 = sphi 0, %s73
      %s95 = sphi 0, %s97
      %s98 = sphi 0, %s95
      %s99 = sphi 0, %s98
      %s115 = sphi 0, %s99
      %s121 = sphi 0, %s123
      %s124 = sphi 0, %s121
      %s125 = sphi 0, %s124
      %s141 = sphi 0, %s125
      %s147 = sphi 0, %s149
      %s150 = sphi 0, %s147
      %s151 = sphi 0, %s150
      %s167 = sphi 0, %s151
      %s173 = sphi 0, %s175
      %s176 = sphi 0, %s173
      %s177 = sphi 0, %s176
      %s193 = sphi 0, %s177
      %s199 = sphi 0, %s201
      %s202 = sphi 0, %s199
      %s203 = sphi 0, %s202
      %s219 = sphi 0, %s203
      %s225 = sphi 0, %s227
      %s228 = sphi 0, %s225
      %s229 = sphi 0, %s228
      %s245 = sphi 0, %s229
      %s251 = sphi 0, %s253
      %s254 = sphi 0, %s251
      %s255 = sphi 0, %s254
      %s271 = sphi 0, %s255
      %s275 = sphi 0, %s275
      %s277 = sphi 0, %s275
      %s278 = sphi 0, %s277
      %s292 = sphi 0, %s278
      %s296 = sphi 0, %s296
      %s298 = sphi 0, %s296
      %s299 = sphi 0, %s298
      %s313 = sphi 0, %s299
      %s317 = sphi 0, %s317
      %s319 = sphi 0, %s317
      %s320 = sphi 0, %s319
      %s334 = sphi 0, %s320
      %s340 = sphi 0, %s342
      %s343 = sphi 0, %s340
      %s344 = sphi 0, %s343
      %s360 = sphi 0, %s344
    $region4: #{transformer_forward.1} parent=1 // loop_header_branch
      %24 = sbr.rel (%p22) target = $region8
    $region5: #{transformer_forward.1} parent=1 // loop_body
      %s26 = ssub.s32 %s21, 1
      %s27 = ssub.s32 %s21, 2
      %s34 = sadd.s32 1, %s29
      %p35 = scmp.ge.s32.totalorder %s34, 6
      %s36 = scalar_select %p35, 0, %s34
      %s37 = sadd.s32 1, %s28
      %s38 = scalar_select %p35, %s37, %s28
      %p39 = scmp.ge.s32.totalorder %s38, 2
      %s40 = scalar_select %p39, 0, %s38
      %s41 = ssub.s32 %s28, %s40
      %p42 = scmp.eq.s32.totalorder %s41, 0
      %s44 = sadd.s32 %s43, 1
      %s45 = scalar_select %p42, %s43, %s44
      %p48 = pneg %p42
      %p49 = scmp.eq.s32.totalorder %s21, 11
      %p50 = por %p48, %p49
      %p51 = scmp.ne.s32.totalorder %s43, %s46
      %p52 = scmp.eq.s32.totalorder %s21, 0
      %p53 = por %p51, %p52
      %p54 = scmp.ne.s32.totalorder %s43, %s46
      %p55 = scmp.eq.s32.totalorder %s26, 11
      %p56 = por %p54, %p55
      %p57 = scmp.ne.s32.totalorder %s46, %s47
      %p58 = scmp.eq.s32.totalorder %s26, 0
      %p59 = por %p57, %p58
      %p60 = scmp.ne.s32.totalorder %s46, %s47
      %p61 = scmp.eq.s32.totalorder %s27, 11
      %p62 = por %p60, %p61
      %p64 = scmp.ne.s32.totalorder %s47, %s63
      %p65 = scmp.eq.s32.totalorder %s27, 0
      %p66 = por %p64, %p65
      %s67 = ssub.s32 %s29, %s36
      %p68 = scmp.eq.s32.totalorder %s67, 0
      %s70 = sadd.s32 %s69, 1
      %s71 = scalar_select %p68, %s69, %s70
      %p74 = pneg %p68
      %p75 = scmp.eq.s32.totalorder %s21, 11
      %p76 = por %p74, %p75
      %p77 = scmp.ne.s32.totalorder %s69, %s72
      %p78 = scmp.eq.s32.totalorder %s21, 0
      %p79 = por %p77, %p78
      %p80 = scmp.ne.s32.totalorder %s69, %s72
      %p81 = scmp.eq.s32.totalorder %s26, 11
      %p82 = por %p80, %p81
      %p83 = scmp.ne.s32.totalorder %s72, %s73
      %p84 = scmp.eq.s32.totalorder %s26, 0
      %p85 = por %p83, %p84
      %p86 = scmp.ne.s32.totalorder %s72, %s73
      %p87 = scmp.eq.s32.totalorder %s27, 11
      %p88 = por %p86, %p87
      %p90 = scmp.ne.s32.totalorder %s73, %s89
      %p91 = scmp.eq.s32.totalorder %s27, 0
      %p92 = por %p90, %p91
      %s93 = ssub.s32 %s29, %s36
      %p94 = scmp.eq.s32.totalorder %s93, 0
      %s96 = sadd.s32 %s95, 1
      %s97 = scalar_select %p94, %s95, %s96
      %p100 = pneg %p94
      %p101 = scmp.eq.s32.totalorder %s21, 11
      %p102 = por %p100, %p101
      %p103 = scmp.ne.s32.totalorder %s95, %s98
      %p104 = scmp.eq.s32.totalorder %s21, 0
      %p105 = por %p103, %p104
      %p106 = scmp.ne.s32.totalorder %s95, %s98
      %p107 = scmp.eq.s32.totalorder %s26, 11
      %p108 = por %p106, %p107
      %p109 = scmp.ne.s32.totalorder %s98, %s99
      %p110 = scmp.eq.s32.totalorder %s26, 0
      %p111 = por %p109, %p110
      %p112 = scmp.ne.s32.totalorder %s98, %s99
      %p113 = scmp.eq.s32.totalorder %s27, 11
      %p114 = por %p112, %p113
      %p116 = scmp.ne.s32.totalorder %s99, %s115
      %p117 = scmp.eq.s32.totalorder %s27, 0
      %p118 = por %p116, %p117
      %s119 = ssub.s32 %s29, %s36
      %p120 = scmp.eq.s32.totalorder %s119, 0
      %s122 = sadd.s32 %s121, 1
      %s123 = scalar_select %p120, %s121, %s122
      %p126 = pneg %p120
      %p127 = scmp.eq.s32.totalorder %s21, 11
      %p128 = por %p126, %p127
      %p129 = scmp.ne.s32.totalorder %s121, %s124
      %p130 = scmp.eq.s32.totalorder %s21, 0
      %p131 = por %p129, %p130
      %p132 = scmp.ne.s32.totalorder %s121, %s124
      %p133 = scmp.eq.s32.totalorder %s26, 11
      %p134 = por %p132, %p133
      %p135 = scmp.ne.s32.totalorder %s124, %s125
      %p136 = scmp.eq.s32.totalorder %s26, 0
      %p137 = por %p135, %p136
      %p138 = scmp.ne.s32.totalorder %s124, %s125
      %p139 = scmp.eq.s32.totalorder %s27, 11
      %p140 = por %p138, %p139
      %p142 = scmp.ne.s32.totalorder %s125, %s141
      %p143 = scmp.eq.s32.totalorder %s27, 0
      %p144 = por %p142, %p143
      %s145 = ssub.s32 %s29, %s36
      %p146 = scmp.eq.s32.totalorder %s145, 0
      %s148 = sadd.s32 %s147, 1
      %s149 = scalar_select %p146, %s147, %s148
      %p152 = pneg %p146
      %p153 = scmp.eq.s32.totalorder %s21, 11
      %p154 = por %p152, %p153
      %p155 = scmp.ne.s32.totalorder %s147, %s150
      %p156 = scmp.eq.s32.totalorder %s21, 0
      %p157 = por %p155, %p156
      %p158 = scmp.ne.s32.totalorder %s147, %s150
      %p159 = scmp.eq.s32.totalorder %s26, 11
      %p160 = por %p158, %p159
      %p161 = scmp.ne.s32.totalorder %s150, %s151
      %p162 = scmp.eq.s32.totalorder %s26, 0
      %p163 = por %p161, %p162
      %p164 = scmp.ne.s32.totalorder %s150, %s151
      %p165 = scmp.eq.s32.totalorder %s27, 11
      %p166 = por %p164, %p165
      %p168 = scmp.ne.s32.totalorder %s151, %s167
      %p169 = scmp.eq.s32.totalorder %s27, 0
      %p170 = por %p168, %p169
      %s171 = ssub.s32 %s29, %s36
      %p172 = scmp.eq.s32.totalorder %s171, 0
      %s174 = sadd.s32 %s173, 1
      %s175 = scalar_select %p172, %s173, %s174
      %p178 = pneg %p172
      %p179 = scmp.eq.s32.totalorder %s21, 11
      %p180 = por %p178, %p179
      %p181 = scmp.ne.s32.totalorder %s173, %s176
      %p182 = scmp.eq.s32.totalorder %s21, 0
      %p183 = por %p181, %p182
      %p184 = scmp.ne.s32.totalorder %s173, %s176
      %p185 = scmp.eq.s32.totalorder %s26, 11
      %p186 = por %p184, %p185
      %p187 = scmp.ne.s32.totalorder %s176, %s177
      %p188 = scmp.eq.s32.totalorder %s26, 0
      %p189 = por %p187, %p188
      %p190 = scmp.ne.s32.totalorder %s176, %s177
      %p191 = scmp.eq.s32.totalorder %s27, 11
      %p192 = por %p190, %p191
      %p194 = scmp.ne.s32.totalorder %s177, %s193
      %p195 = scmp.eq.s32.totalorder %s27, 0
      %p196 = por %p194, %p195
      %s197 = ssub.s32 %s29, %s36
      %p198 = scmp.eq.s32.totalorder %s197, 0
      %s200 = sadd.s32 %s199, 1
      %s201 = scalar_select %p198, %s199, %s200
      %p204 = pneg %p198
      %p205 = scmp.eq.s32.totalorder %s21, 11
      %p206 = por %p204, %p205
      %p207 = scmp.ne.s32.totalorder %s199, %s202
      %p208 = scmp.eq.s32.totalorder %s21, 0
      %p209 = por %p207, %p208
      %p210 = scmp.ne.s32.totalorder %s199, %s202
      %p211 = scmp.eq.s32.totalorder %s26, 11
      %p212 = por %p210, %p211
      %p213 = scmp.ne.s32.totalorder %s202, %s203
      %p214 = scmp.eq.s32.totalorder %s26, 0
      %p215 = por %p213, %p214
      %p216 = scmp.ne.s32.totalorder %s202, %s203
      %p217 = scmp.eq.s32.totalorder %s27, 11
      %p218 = por %p216, %p217
      %p220 = scmp.ne.s32.totalorder %s203, %s219
      %p221 = scmp.eq.s32.totalorder %s27, 0
      %p222 = por %p220, %p221
      %s223 = ssub.s32 %s29, %s36
      %p224 = scmp.eq.s32.totalorder %s223, 0
      %s226 = sadd.s32 %s225, 1
      %s227 = scalar_select %p224, %s225, %s226
      %p230 = pneg %p224
      %p231 = scmp.eq.s32.totalorder %s21, 11
      %p232 = por %p230, %p231
      %p233 = scmp.ne.s32.totalorder %s225, %s228
      %p234 = scmp.eq.s32.totalorder %s21, 0
      %p235 = por %p233, %p234
      %p236 = scmp.ne.s32.totalorder %s225, %s228
      %p237 = scmp.eq.s32.totalorder %s26, 11
      %p238 = por %p236, %p237
      %p239 = scmp.ne.s32.totalorder %s228, %s229
      %p240 = scmp.eq.s32.totalorder %s26, 0
      %p241 = por %p239, %p240
      %p242 = scmp.ne.s32.totalorder %s228, %s229
      %p243 = scmp.eq.s32.totalorder %s27, 11
      %p244 = por %p242, %p243
      %p246 = scmp.ne.s32.totalorder %s229, %s245
      %p247 = scmp.eq.s32.totalorder %s27, 0
      %p248 = por %p246, %p247
      %s249 = ssub.s32 %s29, %s36
      %p250 = scmp.eq.s32.totalorder %s249, 0
      %s252 = sadd.s32 %s251, 1
      %s253 = scalar_select %p250, %s251, %s252
      %p256 = pneg %p250
      %p257 = scmp.eq.s32.totalorder %s21, 11
      %p258 = por %p256, %p257
      %p259 = scmp.ne.s32.totalorder %s251, %s254
      %p260 = scmp.eq.s32.totalorder %s21, 0
      %p261 = por %p259, %p260
      %p262 = scmp.ne.s32.totalorder %s251, %s254
      %p263 = scmp.eq.s32.totalorder %s26, 11
      %p264 = por %p262, %p263
      %p265 = scmp.ne.s32.totalorder %s254, %s255
      %p266 = scmp.eq.s32.totalorder %s26, 0
      %p267 = por %p265, %p266
      %p268 = scmp.ne.s32.totalorder %s254, %s255
      %p269 = scmp.eq.s32.totalorder %s27, 11
      %p270 = por %p268, %p269
      %p272 = scmp.ne.s32.totalorder %s255, %s271
      %p273 = scmp.eq.s32.totalorder %s27, 0
      %p274 = por %p272, %p273
      %s276 = sadd.s32 %s275, 1
      %p279 = scmp.eq.s32.totalorder %s21, 11
      %p280 = scmp.ne.s32.totalorder %s275, %s277
      %p281 = scmp.eq.s32.totalorder %s21, 0
      %p282 = por %p280, %p281
      %p283 = scmp.ne.s32.totalorder %s275, %s277
      %p284 = scmp.eq.s32.totalorder %s26, 11
      %p285 = por %p283, %p284
      %p286 = scmp.ne.s32.totalorder %s277, %s278
      %p287 = scmp.eq.s32.totalorder %s26, 0
      %p288 = por %p286, %p287
      %p289 = scmp.ne.s32.totalorder %s277, %s278
      %p290 = scmp.eq.s32.totalorder %s27, 11
      %p291 = por %p289, %p290
      %p293 = scmp.ne.s32.totalorder %s278, %s292
      %p294 = scmp.eq.s32.totalorder %s27, 0
      %p295 = por %p293, %p294
      %s297 = sadd.s32 %s296, 1
      %p300 = scmp.eq.s32.totalorder %s21, 11
      %p301 = scmp.ne.s32.totalorder %s296, %s298
      %p302 = scmp.eq.s32.totalorder %s21, 0
      %p303 = por %p301, %p302
      %p304 = scmp.ne.s32.totalorder %s296, %s298
      %p305 = scmp.eq.s32.totalorder %s26, 11
      %p306 = por %p304, %p305
      %p307 = scmp.ne.s32.totalorder %s298, %s299
      %p308 = scmp.eq.s32.totalorder %s26, 0
      %p309 = por %p307, %p308
      %p310 = scmp.ne.s32.totalorder %s298, %s299
      %p311 = scmp.eq.s32.totalorder %s27, 11
      %p312 = por %p310, %p311
      %p314 = scmp.ne.s32.totalorder %s299, %s313
      %p315 = scmp.eq.s32.totalorder %s27, 0
      %p316 = por %p314, %p315
      %s318 = sadd.s32 %s317, 1
      %p321 = scmp.eq.s32.totalorder %s21, 11
      %p322 = scmp.ne.s32.totalorder %s317, %s319
      %p323 = scmp.eq.s32.totalorder %s21, 0
      %p324 = por %p322, %p323
      %p325 = scmp.ne.s32.totalorder %s317, %s319
      %p326 = scmp.eq.s32.totalorder %s26, 11
      %p327 = por %p325, %p326
      %p328 = scmp.ne.s32.totalorder %s319, %s320
      %p329 = scmp.eq.s32.totalorder %s26, 0
      %p330 = por %p328, %p329
      %p331 = scmp.ne.s32.totalorder %s319, %s320
      %p332 = scmp.eq.s32.totalorder %s27, 11
      %p333 = por %p331, %p332
      %p335 = scmp.ne.s32.totalorder %s320, %s334
      %p336 = scmp.eq.s32.totalorder %s27, 0
      %p337 = por %p335, %p336
      %s338 = ssub.s32 %s28, %s40
      %p339 = scmp.eq.s32.totalorder %s338, 0
      %s341 = sadd.s32 %s340, 1
      %s342 = scalar_select %p339, %s340, %s341
      %p345 = pneg %p339
      %p346 = scmp.eq.s32.totalorder %s21, 11
      %p347 = por %p345, %p346
      %p348 = scmp.ne.s32.totalorder %s340, %s343
      %p349 = scmp.eq.s32.totalorder %s21, 0
      %p350 = por %p348, %p349
      %p351 = scmp.ne.s32.totalorder %s340, %s343
      %p352 = scmp.eq.s32.totalorder %s26, 11
      %p353 = por %p351, %p352
      %p354 = scmp.ne.s32.totalorder %s343, %s344
      %p355 = scmp.eq.s32.totalorder %s26, 0
      %p356 = por %p354, %p355
      %p357 = scmp.ne.s32.totalorder %s343, %s344
      %p358 = scmp.eq.s32.totalorder %s27, 11
      %p359 = por %p357, %p358
      %p361 = scmp.ne.s32.totalorder %s344, %s360
      %p362 = scmp.eq.s32.totalorder %s27, 0
      %p363 = por %p361, %p362
      %p364 = scmp.le.s32.totalorder 1, %s21
      %p365 = scmp.lt.s32.totalorder %s21, 13
      %p366 = pnand %p364, %p365
      %p367 = pneg %p366
      // Predicated region
      $region9: #{transformer_forward.1} parent=5 // pred_check
        _
      $region10: #{transformer_forward.1} parent=5 // pred_check_branch
        %369 = sbr.rel (%p366) target = $region12
      $region11: #{transformer_forward.1} parent=5 // pred_region
        %s370 = ssub.s32 %s21, 1
        // Predicated region
        $region13: #{transformer_forward.1} parent=11 // pred_check
          %p371 = pneg %p288
        $region14: #{transformer_forward.1} parent=11 // pred_check_branch
          %373 = sbr.rel (%p371) target = $region16
        $region15: #{transformer_forward.1} parent=11 // pred_region
          _
        $region16: #{transformer_forward.1} parent=11 // pred_fallthru
          _
        // Predicated region
        $region17: #{transformer_forward.1} parent=11 // pred_check
          %p374 = pneg %p309
        $region18: #{transformer_forward.1} parent=11 // pred_check_branch
          %376 = sbr.rel (%p374) target = $region20
        $region19: #{transformer_forward.1} parent=11 // pred_region
          _
        $region20: #{transformer_forward.1} parent=11 // pred_fallthru
          _
        // Predicated region
        $region21: #{transformer_forward.1} parent=11 // pred_check
          %p377 = pneg %p330
        $region22: #{transformer_forward.1} parent=11 // pred_check_branch
          %379 = sbr.rel (%p377) target = $region24
        $region23: #{transformer_forward.1} parent=11 // pred_region
          _
        $region24: #{transformer_forward.1} parent=11 // pred_fallthru
          _
      $region12: #{transformer_forward.1} parent=5 // pred_fallthru
        _
      %p380 = scmp.lt.s32.totalorder %s21, 12
      // Predicated region
      $region25: #{transformer_forward.1} parent=5 // pred_check
        %p381 = pneg %p380
      $region26: #{transformer_forward.1} parent=5 // pred_check_branch
        %383 = sbr.rel (%p381) target = $region28
      $region27: #{transformer_forward.1} parent=5 // pred_region
        // Predicated region
        $region29: #{transformer_forward.1} parent=27 // pred_check
          %p384 = pneg %p53
        $region30: #{transformer_forward.1} parent=27 // pred_check_branch
          %386 = sbr.rel (%p384) target = $region32
        $region31: #{transformer_forward.1} parent=27 // pred_region
          %p387 = scmp.lt.s32.totalorder %s28, 1
          %s388 = scalar_select %p387, %s28, 1
          %s389 = smul.addr %s388, 8
          %s390 = scalar_lea.vmem %s0, %s389
        $region32: #{transformer_forward.1} parent=27 // pred_fallthru
          _
        // Predicated region
        $region33: #{transformer_forward.1} parent=27 // pred_check
          %p391 = pneg %p79
        $region34: #{transformer_forward.1} parent=27 // pred_check_branch
          %393 = sbr.rel (%p391) target = $region36
        $region35: #{transformer_forward.1} parent=27 // pred_region
          %p394 = scmp.lt.s32.totalorder %s29, 5
          %s395 = scalar_select %p394, %s29, 5
          %s396 = smul.addr %s395, 4
          %s397 = scalar_lea.vmem %s1, %s396
        $region36: #{transformer_forward.1} parent=27 // pred_fallthru
          _
        // Predicated region
        $region37: #{transformer_forward.1} parent=27 // pred_check
          %p398 = pneg %p105
        $region38: #{transformer_forward.1} parent=27 // pred_check_branch
          %400 = sbr.rel (%p398) target = $region40
        $region39: #{transformer_forward.1} parent=27 // pred_region
          %p401 = scmp.lt.s32.totalorder %s29, 5
          %s402 = scalar_select %p401, %s29, 5
          %s403 = smul.addr %s402, 16
          %s404 = smul.addr %s403, 4
          %s405 = scalar_lea.vmem %s2, %s404
        $region40: #{transformer_forward.1} parent=27 // pred_fallthru
          _
        // Predicated region
        $region41: #{transformer_forward.1} parent=27 // pred_check
          %p406 = pneg %p131
        $region42: #{transformer_forward.1} parent=27 // pred_check_branch
          %408 = sbr.rel (%p406) target = $region44
        $region43: #{transformer_forward.1} parent=27 // pred_region
          %p409 = scmp.lt.s32.totalorder %s29, 5
          %s410 = scalar_select %p409, %s29, 5
          %s411 = smul.addr %s410, 8
          %s412 = smul.addr %s411, 4
          %s413 = scalar_lea.vmem %s3, %s412
        $region44: #{transformer_forward.1} parent=27 // pred_fallthru
          _
        // Predicated region
        $region45: #{transformer_forward.1} parent=27 // pred_check
          %p414 = pneg %p157
        $region46: #{transformer_forward.1} parent=27 // pred_check_branch
          %416 = sbr.rel (%p414) target = $region48
        $region47: #{transformer_forward.1} parent=27 // pred_region
          %p417 = scmp.lt.s32.totalorder %s29, 5
          %s418 = scalar_select %p417, %s29, 5
          %s419 = scalar_lea.vmem %s4, %s418
        $region48: #{transformer_forward.1} parent=27 // pred_fallthru
          _
        // Predicated region
        $region49: #{transformer_forward.1} parent=27 // pred_check
          %p420 = pneg %p183
        $region50: #{transformer_forward.1} parent=27 // pred_check_branch
          %422 = sbr.rel (%p420) target = $region52
        $region51: #{transformer_forward.1} parent=27 // pred_region
          %p423 = scmp.lt.s32.totalorder %s29, 5
          %s424 = scalar_select %p423, %s29, 5
          %s425 = smul.addr %s424, 16
          %s426 = smul.addr %s425, 4
          %s427 = scalar_lea.vmem %s5, %s426
        $region52: #{transformer_forward.1} parent=27 // pred_fallthru
          _
        // Predicated region
        $region53: #{transformer_forward.1} parent=27 // pred_check
          %p428 = pneg %p209
        $region54: #{transformer_forward.1} parent=27 // pred_check_branch
          %430 = sbr.rel (%p428) target = $region56
        $region55: #{transformer_forward.1} parent=27 // pred_region
          %p431 = scmp.lt.s32.totalorder %s29, 5
          %s432 = scalar_select %p431, %s29, 5
          %s433 = smul.addr %s432, 2
          %s434 = scalar_lea.vmem %s6, %s433
        $region56: #{transformer_forward.1} parent=27 // pred_fallthru
          _
        // Predicated region
        $region57: #{transformer_forward.1} parent=27 // pred_check
          %p435 = pneg %p235
        $region58: #{transformer_forward.1} parent=27 // pred_check_branch
          %437 = sbr.rel (%p435) target = $region60
        $region59: #{transformer_forward.1} parent=27 // pred_region
          %p438 = scmp.lt.s32.totalorder %s29, 5
          %s439 = scalar_select %p438, %s29, 5
          %s440 = smul.addr %s439, 32
          %s441 = smul.addr %s440, 4
          %s442 = scalar_lea.vmem %s7, %s441
        $region60: #{transformer_forward.1} parent=27 // pred_fallthru
          _
        // Predicated region
        $region61: #{transformer_forward.1} parent=27 // pred_check
          %p443 = pneg %p261
        $region62: #{transformer_forward.1} parent=27 // pred_check_branch
          %445 = sbr.rel (%p443) target = $region64
        $region63: #{transformer_forward.1} parent=27 // pred_region
          %p446 = scmp.lt.s32.totalorder %s29, 5
          %s447 = scalar_select %p446, %s29, 5
          %s448 = scalar_lea.vmem %s8, %s447
        $region64: #{transformer_forward.1} parent=27 // pred_fallthru
          _
      $region28: #{transformer_forward.1} parent=5 // pred_fallthru
        _
      %p449 = scmp.le.s32.totalorder 1, %s21
      %p450 = scmp.lt.s32.totalorder %s21, 13
      %p451 = pnand %p449, %p450
      %p452 = pneg %p451
      // Predicated region
      $region65: #{transformer_forward.1} parent=5 // pred_check
        _
      $region66: #{transformer_forward.1} parent=5 // pred_check_branch
        %454 = sbr.rel (%p451) target = $region68
      $region67: #{transformer_forward.1} parent=5 // pred_region
        %s455 = ssub.s32 %s21, 1
        %p456 = scmp.lt.s32.totalorder %s30, 1
        %s457 = scalar_select %p456, %s30, 1
        %s458 = smul.addr %s457, 8
        %s459 = scalar_lea.vmem %s0, %s458
        %p460 = pneg %p59
        %p461 = pneg %p56
        %p462 = scmp.lt.s32.totalorder %s31, 5
        %s463 = scalar_select %p462, %s31, 5
        %s464 = smul.addr %s463, 4
        %s465 = scalar_lea.vmem %s1, %s464
        %p466 = pneg %p85
        %p467 = pneg %p82
        %p468 = scmp.lt.s32.totalorder %s31, 5
        %s469 = scalar_select %p468, %s31, 5
        %s470 = smul.addr %s469, 16
        %s471 = smul.addr %s470, 4
        %s472 = scalar_lea.vmem %s2, %s471
        %p473 = pneg %p111
        %p474 = pneg %p108
        %p475 = scmp.lt.s32.totalorder %s31, 5
        %s476 = scalar_select %p475, %s31, 5
        %s477 = smul.addr %s476, 8
        %s478 = smul.addr %s477, 4
        %s479 = scalar_lea.vmem %s3, %s478
        %p480 = pneg %p137
        %p481 = pneg %p134
        %p482 = scmp.lt.s32.totalorder %s31, 5
        %s483 = scalar_select %p482, %s31, 5
        %s484 = scalar_lea.vmem %s4, %s483
        %p485 = pneg %p163
        %p486 = pneg %p160
        %p487 = scmp.lt.s32.totalorder %s31, 5
        %s488 = scalar_select %p487, %s31, 5
        %s489 = smul.addr %s488, 16
        %s490 = smul.addr %s489, 4
        %s491 = scalar_lea.vmem %s5, %s490
        %p492 = pneg %p189
        %p493 = pneg %p186
        %p494 = scmp.lt.s32.totalorder %s31, 5
        %s495 = scalar_select %p494, %s31, 5
        %s496 = smul.addr %s495, 2
        %s497 = scalar_lea.vmem %s6, %s496
        %p498 = pneg %p215
        %p499 = pneg %p212
        %p500 = scmp.lt.s32.totalorder %s31, 5
        %s501 = scalar_select %p500, %s31, 5
        %s502 = smul.addr %s501, 32
        %s503 = smul.addr %s502, 4
        %s504 = scalar_lea.vmem %s7, %s503
        %p505 = pneg %p241
        %p506 = pneg %p238
        %p507 = scmp.lt.s32.totalorder %s31, 5
        %s508 = scalar_select %p507, %s31, 5
        %s509 = scalar_lea.vmem %s8, %s508
        %p510 = pneg %p267
        %p511 = pneg %p264
        %p512 = pneg %p288
        %p513 = pneg %p285
        %p514 = pneg %p309
        %p515 = pneg %p306
        %p516 = pneg %p330
        %p517 = pneg %p327
        %p518 = pneg %p356
        %p519 = pneg %p353
        %s520 = sand.u32 %s343, 1
        %s521 = scalar_lea.sflag [#allocation5], %s520
        %s522 = sand.u32 %s343, 1
        %s523 = smul.addr %s522, 8
        %s524 = scalar_lea.vmem [#allocation4], %s523
        %p525 = scmp.lt.s32.totalorder %s30, 1
        %s526 = scalar_select %p525, %s30, 1
        %s527 = smul.addr %s526, 8
        %s528 = scalar_lea.vmem %s0, %s527
        %p529 = scmp.lt.s32.totalorder %s31, 5
        %s530 = scalar_select %p529, %s31, 5
        %s531 = smul.addr %s530, 4
        %s532 = scalar_lea.vmem %s1, %s531
        %p533 = scmp.lt.s32.totalorder %s31, 5
        %s534 = scalar_select %p533, %s31, 5
        %s535 = smul.addr %s534, 16
        %s536 = smul.addr %s535, 4
        %s537 = scalar_lea.vmem %s2, %s536
        %p538 = scmp.lt.s32.totalorder %s31, 5
        %s539 = scalar_select %p538, %s31, 5
        %s540 = smul.addr %s539, 8
        %s541 = smul.addr %s540, 4
        %s542 = scalar_lea.vmem %s3, %s541
        %p543 = scmp.lt.s32.totalorder %s31, 5
        %s544 = scalar_select %p543, %s31, 5
        %s545 = scalar_lea.vmem %s4, %s544
        %p546 = scmp.lt.s32.totalorder %s31, 5
        %s547 = scalar_select %p546, %s31, 5
        %s548 = smul.addr %s547, 16
        %s549 = smul.addr %s548, 4
        %s550 = scalar_lea.vmem %s5, %s549
        %p551 = scmp.lt.s32.totalorder %s31, 5
        %s552 = scalar_select %p551, %s31, 5
        %s553 = smul.addr %s552, 2
        %s554 = scalar_lea.vmem %s6, %s553
        %p555 = scmp.lt.s32.totalorder %s31, 5
        %s556 = scalar_select %p555, %s31, 5
        %s557 = smul.addr %s556, 32
        %s558 = smul.addr %s557, 4
        %s559 = scalar_lea.vmem %s7, %s558
        %p560 = scmp.lt.s32.totalorder %s31, 5
        %s561 = scalar_select %p560, %s31, 5
        %s562 = scalar_lea.vmem %s8, %s561
        %p564 = scmp.eq.s32.totalorder %s31, 0
        // Predicated region
        $region69: #{transformer_forward.1} parent=67 // pred_check
          %p565 = pneg %p564
        $region70: #{transformer_forward.1} parent=67 // pred_check_branch
          %567 = sbr.rel (%p565) target = $region72
        $region71: #{transformer_forward.1} parent=67 // pred_region
          %v568 = vld [vmem:[%s528] sm:$0xff]
          %vm569 = vcmask 523264
          %570 = vst.msk [vmem:[#allocation2] sm:$0xff] %vm569, %v568
          %v571 = vlaneseq
          %v572 = vshrl.u32 %v571, 7
          %v573 = vlaneseq
          %v574 = vand.u32 %v573, 127
          %vm575 = vcmp.ge.s32.totalorder %v572, %v574
          %v576 = vsel %vm575, 0.0, -1e+30
          %vm577 = vcmask 64512
          %578 = vst.msk [vmem:[#allocation3] sm:$0xff] %vm577, %v576
        $region72: #{transformer_forward.1} parent=67 // pred_fallthru
          _
        %v579 = vld [vmem:[#allocation2] sm:$0xff]
        %v580 = vld [vmem:[#allocation3] sm:$0xff]
        %v581 = vld [vmem:[%s532] sm:$0x1]
        %v582 = vld [vmem:[%s532 + $0x1] sm:$0x1]
        %v583 = vld [vmem:[%s532 + $0x2] sm:$0x1]
        %v584 = vld [vmem:[%s532 + $0x3] sm:$0x1]
        %vm585 = vcmask 523264
        %v586 = vsel %vm585, %v579, 0.0
        %587 = vadd.xlane.f32.xlu0 %v586
        %v588 = vpop.xlane.xlu0 %587
        %v589 = vrcp.pop 64.0
        %v590 = vmul.f32 %v588, %v589
        %v591 = vsub.f32 %v579, %v590
        %v592 = vmul.f32 %v591, %v591
        %v593 = vsel %vm585, %v592, 0.0
        %594 = vadd.xlane.f32.xlu0 %v593
        %v595 = vpop.xlane.xlu0 %594
        %v596 = vmul.f32 %v595, %v589
        %v597 = vadd.f32 %v596, 1e-05
        %v598 = vrsqrt.pop %v597
        %v599 = vmul.f32 %v591, %v598
        %v601 = vlaneseq
        %v602 = vshrl.u32 %v601, 7
        %v603 = vsub.s32 0, %v602
        %v604 = vrot.slane %v581, %v603
        %v606 = vmul.f32 %v599, %v604
        %v608 = vlaneseq
        %v609 = vshrl.u32 %v608, 7
        %v610 = vsub.s32 0, %v609
        %v611 = vrot.slane %v582, %v610
        %v613 = vadd.f32 %v606, %v611
        %v614 = vpack.c.bf16 %v613, %v613
        %v615 = vld [vmem:[%s537] sm:$0xff]
        %v616 = vld [vmem:[%s537 + $0x8] sm:$0xff]
        %v617 = vld [vmem:[%s537 + $0x10] sm:$0xff]
        %v618 = vld [vmem:[%s537 + $0x18] sm:$0xff]
        %v619 = vld [vmem:[%s537 + $0x20] sm:$0xff]
        %v620 = vld [vmem:[%s537 + $0x28] sm:$0xff]
        %v621 = vld [vmem:[%s537 + $0x30] sm:$0xff]
        %v622 = vld [vmem:[%s537 + $0x38] sm:$0xff]
        %v631 = vunpack.c.l.b16 %v615
        %v632 = vunpack.c.h.b16 %v615
        %v633 = vunpack.c.l.b16 %v616
        %v634 = vunpack.c.h.b16 %v616
        %v635 = vunpack.c.l.b16 %v617
        %v636 = vunpack.c.h.b16 %v617
        %v637 = vunpack.c.l.b16 %v618
        %v638 = vunpack.c.h.b16 %v618
        %v639 = vunpack.c.l.b16 %v619
        %v640 = vunpack.c.h.b16 %v619
        %v641 = vunpack.c.l.b16 %v620
        %v642 = vunpack.c.h.b16 %v620
        %v643 = vunpack.c.l.b16 %v621
        %v644 = vunpack.c.h.b16 %v621
        %v645 = vunpack.c.l.b16 %v622
        %v646 = vunpack.c.h.b16 %v622
        %v647 = vpack.c.b16 %v633, %v631
        %v648 = vpack.c.b16 %v634, %v632
        %v649 = vpack.c.b16 %v637, %v635
        %v650 = vpack.c.b16 %v638, %v636
        %v651 = vpack.c.b16 %v641, %v639
        %v652 = vpack.c.b16 %v642, %v640
        %v653 = vpack.c.b16 %v645, %v643
        %v654 = vpack.c.b16 %v646, %v644
        %v664 = vsel %vm585, %v614, 0
        %666 = vmatprep.subr.bf16.mxu0 %v648
        %667 = vmatpush1.bf16.msra.mxu0 %v647
        %668 = vmatprep.subr.bf16.mxu0 %v650
        %669 = vmatpush1.bf16.msra.mxu0 %v649
        %670 = vmatprep.subr.bf16.mxu0 %v652
        %671 = vmatpush1.bf16.msra.mxu0 %v651
        %672 = vmatprep.subr.bf16.mxu0 %v654
        %673 = vmatpush1.bf16.msra.mxu0 %v653
        %674 = vmatprep.subr.bf16.mxu0 0
        %675 = vmatpush1.bf16.msra.mxu0 0
        %676 = vmatprep.subr.bf16.mxu0 0
        %677 = vmatpush1.bf16.msra.mxu0 0
        %678 = vmatprep.subr.bf16.mxu0 0
        %679 = vmatpush1.bf16.msra.mxu0 0
        %680 = vmatprep.subr.bf16.mxu0 0
        %681 = vmatpush1.bf16.msra.mxu0 0
        %682 = vmatprep.subr.bf16.mxu0 0
        %683 = vmatpush1.bf16.msra.mxu0 0
        %684 = vmatprep.subr.bf16.mxu0 0
        %685 = vmatpush1.bf16.msra.mxu0 0
        %686 = vmatprep.subr.bf16.mxu0 0
        %687 = vmatpush1.bf16.msra.mxu0 0
        %688 = vmatprep.subr.bf16.mxu0 0
        %689 = vmatpush1.bf16.msra.mxu0 0
        %690 = vmatprep.subr.bf16.mxu0 0
        %691 = vmatpush1.bf16.msra.mxu0 0
        %692 = vmatprep.subr.bf16.mxu0 0
        %693 = vmatpush1.bf16.msra.mxu0 0
        %694 = vmatprep.subr.bf16.mxu0 0
        %695 = vmatpush1.bf16.msra.mxu0 0
        %696 = vmatprep.subr.bf16.mxu0 0
        %697 = vmatpush1.bf16.msra.mxu0 0
        %698 = vmatprep.mubr.bf16.mxu0 0
        %699 = vmatmul.mubr.bf16.gmra.mrb[0].mxu0 %v664
        %v700 = vpop.f32.mrb[0].mxu0
        %v701 = vadd.f32 0.0, %v700
        %v702 = vpop.f32.mrb[0].mxu0
        %v703 = vadd.f32 0.0, %v702
        %v704 = vpop.f32.mrb[0].mxu0
        %v705 = vpop.f32.mrb[0].mxu0
        %706 = vdwg.mxu0
        %v707 = vpack.c.bf16 %v701, %v701
        %v708 = vpack.c.bf16 %v703, %v703
        %710 = vrot.lane.b32.xlu0 %v707, 64
        %v711 = vpop.permute.xlu0 %710
        %vm712 = vcmask 64512
        %v714 = vsel %vm712, %v707, 0
        %v717 = vsel %vm712, %v711, 0
        %719 = vmatprep.subr.bf16.mxu0 0
        %720 = vmatpush1.bf16.xpose.msra.mxu0 %v717
        %721 = vmatprep.subr.bf16.mxu0 0
        %722 = vmatpush1.bf16.xpose.msra.mxu0 0
        %723 = vmatprep.subr.bf16.mxu0 0
        %724 = vmatpush1.bf16.xpose.msra.mxu0 0
        %725 = vmatprep.subr.bf16.mxu0 0
        %726 = vmatpush1.bf16.xpose.msra.mxu0 0
        %727 = vmatprep.subr.bf16.mxu0 0
        %728 = vmatpush1.bf16.xpose.msra.mxu0 0
        %729 = vmatprep.subr.bf16.mxu0 0
        %730 = vmatpush1.bf16.xpose.msra.mxu0 0
        %731 = vmatprep.subr.bf16.mxu0 0
        %732 = vmatpush1.bf16.xpose.msra.mxu0 0
        %733 = vmatprep.subr.bf16.mxu0 0
        %734 = vmatpush1.bf16.xpose.msra.mxu0 0
        %735 = vmatprep.subr.bf16.mxu0 0
        %736 = vmatpush1.bf16.xpose.msra.mxu0 0
        %737 = vmatprep.subr.bf16.mxu0 0
        %738 = vmatpush1.bf16.xpose.msra.mxu0 0
        %739 = vmatprep.subr.bf16.mxu0 0
        %740 = vmatpush1.bf16.xpose.msra.mxu0 0
        %741 = vmatprep.subr.bf16.mxu0 0
        %742 = vmatpush1.bf16.xpose.msra.mxu0 0
        %743 = vmatprep.subr.bf16.mxu0 0
        %744 = vmatpush1.bf16.xpose.msra.mxu0 0
        %745 = vmatprep.subr.bf16.mxu0 0
        %746 = vmatpush1.bf16.xpose.msra.mxu0 0
        %747 = vmatprep.subr.bf16.mxu0 0
        %748 = vmatpush1.bf16.xpose.msra.mxu0 0
        %749 = vmatprep.subr.bf16.mxu0 0
        %750 = vmatpush1.bf16.xpose.msra.mxu0 0
        %751 = vmatprep.mubr.bf16.mxu0 0
        %752 = vmatmul.mubr.bf16.gmra.mrb[0].mxu0 %v714
        %v753 = vpop.f32.mrb[0].mxu0
        %v754 = vadd.f32 %v580, %v753
        %v755 = vpop.f32.mrb[0].mxu0
        %v756 = vpop.f32.mrb[0].mxu0
        %v757 = vpop.f32.mrb[0].mxu0
        %758 = vdwg.mxu0
        %v759 = vsel %vm712, %v754, -inf
        %760 = vmax.xlane.f32.xlu0 %v759
        %v761 = vpop.xlane.xlu0 %760
        %v762 = vsub.f32 %v754, %v761
        %v763 = vmul.f32 %v762, 1.442695
        %v764 = vpow.pop %v763
        %v765 = vsel %vm712, %v764, 0.0
        %766 = vadd.xlane.f32.xlu0 %v765
        %v767 = vpop.xlane.xlu0 %766
        %v768 = vrcp.pop %v767
        %v769 = vmul.f32 %v764, %v768
        %v770 = vpack.c.bf16 %v769, %v769
        %v772 = vsel %vm712, %v770, 0
        %vm774 = vcmask 1043456
        %v776 = vsel %vm774, %v708, 0
        %778 = vmatprep.subr.bf16.mxu0 0
        %779 = vmatpush1.bf16.msra.mxu0 %v776
        %780 = vmatprep.subr.bf16.mxu0 0
        %781 = vmatpush1.bf16.msra.mxu0 0
        %782 = vmatprep.subr.bf16.mxu0 0
        %783 = vmatpush1.bf16.msra.mxu0 0
        %784 = vmatprep.subr.bf16.mxu0 0
        %785 = vmatpush1.bf16.msra.mxu0 0
        %786 = vmatprep.subr.bf16.mxu0 0
        %787 = vmatpush1.bf16.msra.mxu0 0
        %788 = vmatprep.subr.bf16.mxu0 0
        %789 = vmatpush1.bf16.msra.mxu0 0
        %790 = vmatprep.subr.bf16.mxu0 0
        %791 = vmatpush1.bf16.msra.mxu0 0
        %792 = vmatprep.subr.bf16.mxu0 0
        %793 = vmatpush1.bf16.msra.mxu0 0
        %794 = vmatprep.subr.bf16.mxu0 0
        %795 = vmatpush1.bf16.msra.mxu0 0
        %796 = vmatprep.subr.bf16.mxu0 0
        %797 = vmatpush1.bf16.msra.mxu0 0
        %798 = vmatprep.subr.bf16.mxu0 0
        %799 = vmatpush1.bf16.msra.mxu0 0
        %800 = vmatprep.subr.bf16.mxu0 0
        %801 = vmatpush1.bf16.msra.mxu0 0
        %802 = vmatprep.subr.bf16.mxu0 0
        %803 = vmatpush1.bf16.msra.mxu0 0
        %804 = vmatprep.subr.bf16.mxu0 0
        %805 = vmatpush1.bf16.msra.mxu0 0
        %806 = vmatprep.subr.bf16.mxu0 0
        %807 = vmatpush1.bf16.msra.mxu0 0
        %808 = vmatprep.subr.bf16.mxu0 0
        %809 = vmatpush1.bf16.msra.mxu0 0
        %810 = vmatprep.mubr.bf16.mxu0 0
        %811 = vmatmul.mubr.bf16.gmra.mrb[0].mxu0 %v772
        %v812 = vpop.f32.mrb[0].mxu0
        %v813 = vadd.f32 0.0, %v812
        %v814 = vpop.f32.mrb[0].mxu0
        %v815 = vpop.f32.mrb[0].mxu0
        %v816 = vpop.f32.mrb[0].mxu0
        %817 = vdwg.mxu0
        %v818 = vpack.c.bf16 %v813, %v813
        %819 = vrot.lane.b32.xlu0 %v707, 120
        %v820 = vpop.permute.xlu0 %819
        %821 = vrot.lane.b32.xlu0 %v707, 56
        %v822 = vpop.permute.xlu0 %821
        %v824 = vsel %vm712, %v820, 0
        %v827 = vsel %vm712, %v822, 0
        %829 = vmatprep.subr.bf16.mxu0 0
        %830 = vmatpush1.bf16.xpose.msra.mxu0 %v827
        %831 = vmatprep.subr.bf16.mxu0 0
        %832 = vmatpush1.bf16.xpose.msra.mxu0 0
        %833 = vmatprep.subr.bf16.mxu0 0
        %834 = vmatpush1.bf16.xpose.msra.mxu0 0
        %835 = vmatprep.subr.bf16.mxu0 0
        %836 = vmatpush1.bf16.xpose.msra.mxu0 0
        %837 = vmatprep.subr.bf16.mxu0 0
        %838 = vmatpush1.bf16.xpose.msra.mxu0 0
        %839 = vmatprep.subr.bf16.mxu0 0
        %840 = vmatpush1.bf16.xpose.msra.mxu0 0
        %841 = vmatprep.subr.bf16.mxu0 0
        %842 = vmatpush1.bf16.xpose.msra.mxu0 0
        %843 = vmatprep.subr.bf16.mxu0 0
        %844 = vmatpush1.bf16.xpose.msra.mxu0 0
        %845 = vmatprep.subr.bf16.mxu0 0
        %846 = vmatpush1.bf16.xpose.msra.mxu0 0
        %847 = vmatprep.subr.bf16.mxu0 0
        %848 = vmatpush1.bf16.xpose.msra.mxu0 0
        %849 = vmatprep.subr.bf16.mxu0 0
        %850 = vmatpush1.bf16.xpose.msra.mxu0 0
        %851 = vmatprep.subr.bf16.mxu0 0
        %852 = vmatpush1.bf16.xpose.msra.mxu0 0
        %853 = vmatprep.subr.bf16.mxu0 0
        %854 = vmatpush1.bf16.xpose.msra.mxu0 0
        %855 = vmatprep.subr.bf16.mxu0 0
        %856 = vmatpush1.bf16.xpose.msra.mxu0 0
        %857 = vmatprep.subr.bf16.mxu0 0
        %858 = vmatpush1.bf16.xpose.msra.mxu0 0
        %859 = vmatprep.subr.bf16.mxu0 0
        %860 = vmatpush1.bf16.xpose.msra.mxu0 0
        %861 = vmatprep.mubr.bf16.mxu0 0
        %862 = vmatmul.mubr.bf16.gmra.mrb[0].mxu0 %v824
        %v863 = vpop.f32.mrb[0].mxu0
        %v864 = vadd.f32 %v580, %v863
        %v865 = vpop.f32.mrb[0].mxu0
        %v866 = vpop.f32.mrb[0].mxu0
        %v867 = vpop.f32.mrb[0].mxu0
        %868 = vdwg.mxu0
        %v869 = vsel %vm712, %v864, -inf
        %870 = vmax.xlane.f32.xlu0 %v869
        %v871 = vpop.xlane.xlu0 %870
        %v872 = vsub.f32 %v864, %v871
        %v873 = vmul.f32 %v872, 1.442695
        %v874 = vpow.pop %v873
        %v875 = vsel %vm712, %v874, 0.0
        %876 = vadd.xlane.f32.xlu0 %v875
        %v877 = vpop.xlane.xlu0 %876
        %v878 = vrcp.pop %v877
        %v879 = vmul.f32 %v874, %v878
        %v880 = vpack.c.bf16 %v879, %v879
        %882 = vrot.lane.b32.xlu0 %v708, 120
        %v883 = vpop.permute.xlu0 %882
        %v885 = vsel %vm712, %v880, 0
        %v888 = vsel %vm774, %v883, 0
        %890 = vmatprep.subr.bf16.mxu0 0
        %891 = vmatpush1.bf16.msra.mxu0 %v888
        %892 = vmatprep.subr.bf16.mxu0 0
        %893 = vmatpush1.bf16.msra.mxu0 0
        %894 = vmatprep.subr.bf16.mxu0 0
        %895 = vmatpush1.bf16.msra.mxu0 0
        %896 = vmatprep.subr.bf16.mxu0 0
        %897 = vmatpush1.bf16.msra.mxu0 0
        %898 = vmatprep.subr.bf16.mxu0 0
        %899 = vmatpush1.bf16.msra.mxu0 0
        %900 = vmatprep.subr.bf16.mxu0 0
        %901 = vmatpush1.bf16.msra.mxu0 0
        %902 = vmatprep.subr.bf16.mxu0 0
        %903 = vmatpush1.bf16.msra.mxu0 0
        %904 = vmatprep.subr.bf16.mxu0 0
        %905 = vmatpush1.bf16.msra.mxu0 0
        %906 = vmatprep.subr.bf16.mxu0 0
        %907 = vmatpush1.bf16.msra.mxu0 0
        %908 = vmatprep.subr.bf16.mxu0 0
        %909 = vmatpush1.bf16.msra.mxu0 0
        %910 = vmatprep.subr.bf16.mxu0 0
        %911 = vmatpush1.bf16.msra.mxu0 0
        %912 = vmatprep.subr.bf16.mxu0 0
        %913 = vmatpush1.bf16.msra.mxu0 0
        %914 = vmatprep.subr.bf16.mxu0 0
        %915 = vmatpush1.bf16.msra.mxu0 0
        %916 = vmatprep.subr.bf16.mxu0 0
        %917 = vmatpush1.bf16.msra.mxu0 0
        %918 = vmatprep.subr.bf16.mxu0 0
        %919 = vmatpush1.bf16.msra.mxu0 0
        %920 = vmatprep.subr.bf16.mxu0 0
        %921 = vmatpush1.bf16.msra.mxu0 0
        %922 = vmatprep.mubr.bf16.mxu0 0
        %923 = vmatmul.mubr.bf16.gmra.mrb[0].mxu0 %v885
        %v924 = vpop.f32.mrb[0].mxu0
        %v925 = vadd.f32 0.0, %v924
        %v926 = vpop.f32.mrb[0].mxu0
        %v927 = vpop.f32.mrb[0].mxu0
        %v928 = vpop.f32.mrb[0].mxu0
        %929 = vdwg.mxu0
        %v930 = vpack.c.bf16 %v925, %v925
        %931 = vrot.lane.b32.xlu0 %v707, 112
        %v932 = vpop.permute.xlu0 %931
        %933 = vrot.lane.b32.xlu0 %v707, 48
        %v934 = vpop.permute.xlu0 %933
        %v936 = vsel %vm712, %v932, 0
        %v939 = vsel %vm712, %v934, 0
        %941 = vmatprep.subr.bf16.mxu0 0
        %942 = vmatpush1.bf16.xpose.msra.mxu0 %v939
        %943 = vmatprep.subr.bf16.mxu0 0
        %944 = vmatpush1.bf16.xpose.msra.mxu0 0
        %945 = vmatprep.subr.bf16.mxu0 0
        %946 = vmatpush1.bf16.xpose.msra.mxu0 0
        %947 = vmatprep.subr.bf16.mxu0 0
        %948 = vmatpush1.bf16.xpose.msra.mxu0 0
        %949 = vmatprep.subr.bf16.mxu0 0
        %950 = vmatpush1.bf16.xpose.msra.mxu0 0
        %951 = vmatprep.subr.bf16.mxu0 0
        %952 = vmatpush1.bf16.xpose.msra.mxu0 0
        %953 = vmatprep.subr.bf16.mxu0 0
        %954 = vmatpush1.bf16.xpose.msra.mxu0 0
        %955 = vmatprep.subr.bf16.mxu0 0
        %956 = vmatpush1.bf16.xpose.msra.mxu0 0
        %957 = vmatprep.subr.bf16.mxu0 0
        %958 = vmatpush1.bf16.xpose.msra.mxu0 0
        %959 = vmatprep.subr.bf16.mxu0 0
        %960 = vmatpush1.bf16.xpose.msra.mxu0 0
        %961 = vmatprep.subr.bf16.mxu0 0
        %962 = vmatpush1.bf16.xpose.msra.mxu0 0
        %963 = vmatprep.subr.bf16.mxu0 0
        %964 = vmatpush1.bf16.xpose.msra.mxu0 0
        %965 = vmatprep.subr.bf16.mxu0 0
        %966 = vmatpush1.bf16.xpose.msra.mxu0 0
        %967 = vmatprep.subr.bf16.mxu0 0
        %968 = vmatpush1.bf16.xpose.msra.mxu0 0
        %969 = vmatprep.subr.bf16.mxu0 0
        %970 = vmatpush1.bf16.xpose.msra.mxu0 0
        %971 = vmatprep.subr.bf16.mxu0 0
        %972 = vmatpush1.bf16.xpose.msra.mxu0 0
        %973 = vmatprep.mubr.bf16.mxu0 0
        %974 = vmatmul.mubr.bf16.gmra.mrb[0].mxu0 %v936
        %v975 = vpop.f32.mrb[0].mxu0
        %v976 = vadd.f32 %v580, %v975
        %v977 = vpop.f32.mrb[0].mxu0
        %v978 = vpop.f32.mrb[0].mxu0
        %v979 = vpop.f32.mrb[0].mxu0
        %980 = vdwg.mxu0
        %v981 = vsel %vm712, %v976, -inf
        %982 = vmax.xlane.f32.xlu0 %v981
        %v983 = vpop.xlane.xlu0 %982
        %v984 = vsub.f32 %v976, %v983
        %v985 = vmul.f32 %v984, 1.442695
        %v986 = vpow.pop %v985
        %v987 = vsel %vm712, %v986, 0.0
        %988 = vadd.xlane.f32.xlu0 %v987
        %v989 = vpop.xlane.xlu0 %988
        %v990 = vrcp.pop %v989
        %v991 = vmul.f32 %v986, %v990
        %v992 = vpack.c.bf16 %v991, %v991
        %993 = vrot.lane.b32.xlu0 %v708, 112
        %v994 = vpop.permute.xlu0 %993
        %v996 = vsel %vm712, %v992, 0
        %v999 = vsel %vm774, %v994, 0
        %1001 = vmatprep.subr.bf16.mxu0 0
        %1002 = vmatpush1.bf16.msra.mxu0 %v999
        %1003 = vmatprep.subr.bf16.mxu0 0
        %1004 = vmatpush1.bf16.msra.mxu0 0
        %1005 = vmatprep.subr.bf16.mxu0 0
        %1006 = vmatpush1.bf16.msra.mxu0 0
        %1007 = vmatprep.subr.bf16.mxu0 0
        %1008 = vmatpush1.bf16.msra.mxu0 0
        %1009 = vmatprep.subr.bf16.mxu0 0
        %1010 = vmatpush1.bf16.msra.mxu0 0
        %1011 = vmatprep.subr.bf16.mxu0 0
        %1012 = vmatpush1.bf16.msra.mxu0 0
        %1013 = vmatprep.subr.bf16.mxu0 0
        %1014 = vmatpush1.bf16.msra.mxu0 0
        %1015 = vmatprep.subr.bf16.mxu0 0
        %1016 = vmatpush1.bf16.msra.mxu0 0
        %1017 = vmatprep.subr.bf16.mxu0 0
        %1018 = vmatpush1.bf16.msra.mxu0 0
        %1019 = vmatprep.subr.bf16.mxu0 0
        %1020 = vmatpush1.bf16.msra.mxu0 0
        %1021 = vmatprep.subr.bf16.mxu0 0
        %1022 = vmatpush1.bf16.msra.mxu0 0
        %1023 = vmatprep.subr.bf16.mxu0 0
        %1024 = vmatpush1.bf16.msra.mxu0 0
        %1025 = vmatprep.subr.bf16.mxu0 0
        %1026 = vmatpush1.bf16.msra.mxu0 0
        %1027 = vmatprep.subr.bf16.mxu0 0
        %1028 = vmatpush1.bf16.msra.mxu0 0
        %1029 = vmatprep.subr.bf16.mxu0 0
        %1030 = vmatpush1.bf16.msra.mxu0 0
        %1031 = vmatprep.subr.bf16.mxu0 0
        %1032 = vmatpush1.bf16.msra.mxu0 0
        %1033 = vmatprep.mubr.bf16.mxu0 0
        %1034 = vmatmul.mubr.bf16.gmra.mrb[0].mxu0 %v996
        %v1035 = vpop.f32.mrb[0].mxu0
        %v1036 = vadd.f32 0.0, %v1035
        %v1037 = vpop.f32.mrb[0].mxu0
        %v1038 = vpop.f32.mrb[0].mxu0
        %v1039 = vpop.f32.mrb[0].mxu0
        %1040 = vdwg.mxu0
        %v1041 = vpack.c.bf16 %v1036, %v1036
        %1042 = vrot.lane.b32.xlu0 %v707, 104
        %v1043 = vpop.permute.xlu0 %1042
        %1044 = vrot.lane.b32.xlu0 %v707, 40
        %v1045 = vpop.permute.xlu0 %1044
        %v1047 = vsel %vm712, %v1043, 0
        %v1050 = vsel %vm712, %v1045, 0
        %1052 = vmatprep.subr.bf16.mxu0 0
        %1053 = vmatpush1.bf16.xpose.msra.mxu0 %v1050
        %1054 = vmatprep.subr.bf16.mxu0 0
        %1055 = vmatpush1.bf16.xpose.msra.mxu0 0
        %1056 = vmatprep.subr.bf16.mxu0 0
        %1057 = vmatpush1.bf16.xpose.msra.mxu0 0
        %1058 = vmatprep.subr.bf16.mxu0 0
        %1059 = vmatpush1.bf16.xpose.msra.mxu0 0
        %1060 = vmatprep.subr.bf16.mxu0 0
        %1061 = vmatpush1.bf16.xpose.msra.mxu0 0
        %1062 = vmatprep.subr.bf16.mxu0 0
        %1063 = vmatpush1.bf16.xpose.msra.mxu0 0
        %1064 = vmatprep.subr.bf16.mxu0 0
        %1065 = vmatpush1.bf16.xpose.msra.mxu0 0
        %1066 = vmatprep.subr.bf16.mxu0 0
        %1067 = vmatpush1.bf16.xpose.msra.mxu0 0
        %1068 = vmatprep.subr.bf16.mxu0 0
        %1069 = vmatpush1.bf16.xpose.msra.mxu0 0
        %1070 = vmatprep.subr.bf16.mxu0 0
        %1071 = vmatpush1.bf16.xpose.msra.mxu0 0
        %1072 = vmatprep.subr.bf16.mxu0 0
        %1073 = vmatpush1.bf16.xpose.msra.mxu0 0
        %1074 = vmatprep.subr.bf16.mxu0 0
        %1075 = vmatpush1.bf16.xpose.msra.mxu0 0
        %1076 = vmatprep.subr.bf16.mxu0 0
        %1077 = vmatpush1.bf16.xpose.msra.mxu0 0
        %1078 = vmatprep.subr.bf16.mxu0 0
        %1079 = vmatpush1.bf16.xpose.msra.mxu0 0
        %1080 = vmatprep.subr.bf16.mxu0 0
        %1081 = vmatpush1.bf16.xpose.msra.mxu0 0
        %1082 = vmatprep.subr.bf16.mxu0 0
        %1083 = vmatpush1.bf16.xpose.msra.mxu0 0
        %1084 = vmatprep.mubr.bf16.mxu0 0
        %1085 = vmatmul.mubr.bf16.gmra.mrb[0].mxu0 %v1047
        %v1086 = vpop.f32.mrb[0].mxu0
        %v1087 = vadd.f32 %v580, %v1086
        %v1088 = vpop.f32.mrb[0].mxu0
        %v1089 = vpop.f32.mrb[0].mxu0
        %v1090 = vpop.f32.mrb[0].mxu0
        %1091 = vdwg.mxu0
        %v1092 = vsel %vm712, %v1087, -inf
        %1093 = vmax.xlane.f32.xlu0 %v1092
        %v1094 = vpop.xlane.xlu0 %1093
        %v1095 = vsub.f32 %v1087, %v1094
        %v1096 = vmul.f32 %v1095, 1.442695
        %v1097 = vpow.pop %v1096
        %v1098 = vsel %vm712, %v1097, 0.0
        %1099 = vadd.xlane.f32.xlu0 %v1098
        %v1100 = vpop.xlane.xlu0 %1099
        %v1101 = vrcp.pop %v1100
        %v1102 = vmul.f32 %v1097, %v1101
        %v1103 = vpack.c.bf16 %v1102, %v1102
        %1104 = vrot.lane.b32.xlu0 %v708, 104
        %v1105 = vpop.permute.xlu0 %1104
        %v1107 = vsel %vm712, %v1103, 0
        %v1110 = vsel %vm774, %v1105, 0
        %1112 = vmatprep.subr.bf16.mxu0 0
        %1113 = vmatpush1.bf16.msra.mxu0 %v1110
        %1114 = vmatprep.subr.bf16.mxu0 0
        %1115 = vmatpush1.bf16.msra.mxu0 0
        %1116 = vmatprep.subr.bf16.mxu0 0
        %1117 = vmatpush1.bf16.msra.mxu0 0
        %1118 = vmatprep.subr.bf16.mxu0 0
        %1119 = vmatpush1.bf16.msra.mxu0 0
        %1120 = vmatprep.subr.bf16.mxu0 0
        %1121 = vmatpush1.bf16.msra.mxu0 0
        %1122 = vmatprep.subr.bf16.mxu0 0
        %1123 = vmatpush1.bf16.msra.mxu0 0
        %1124 = vmatprep.subr.bf16.mxu0 0
        %1125 = vmatpush1.bf16.msra.mxu0 0
        %1126 = vmatprep.subr.bf16.mxu0 0
        %1127 = vmatpush1.bf16.msra.mxu0 0
        %1128 = vmatprep.subr.bf16.mxu0 0
        %1129 = vmatpush1.bf16.msra.mxu0 0
        %1130 = vmatprep.subr.bf16.mxu0 0
        %1131 = vmatpush1.bf16.msra.mxu0 0
        %1132 = vmatprep.subr.bf16.mxu0 0
        %1133 = vmatpush1.bf16.msra.mxu0 0
        %1134 = vmatprep.subr.bf16.mxu0 0
        %1135 = vmatpush1.bf16.msra.mxu0 0
        %1136 = vmatprep.subr.bf16.mxu0 0
        %1137 = vmatpush1.bf16.msra.mxu0 0
        %1138 = vmatprep.subr.bf16.mxu0 0
        %1139 = vmatpush1.bf16.msra.mxu0 0
        %1140 = vmatprep.subr.bf16.mxu0 0
        %1141 = vmatpush1.bf16.msra.mxu0 0
        %1142 = vmatprep.subr.bf16.mxu0 0
        %1143 = vmatpush1.bf16.msra.mxu0 0
        %1144 = vmatprep.mubr.bf16.mxu0 0
        %1145 = vmatmul.mubr.bf16.gmra.mrb[0].mxu0 %v1107
        %v1146 = vpop.f32.mrb[0].mxu0
        %v1147 = vadd.f32 0.0, %v1146
        %v1148 = vpop.f32.mrb[0].mxu0
        %v1149 = vpop.f32.mrb[0].mxu0
        %v1150 = vpop.f32.mrb[0].mxu0
        %1151 = vdwg.mxu0
        %v1152 = vpack.c.bf16 %v1147, %v1147
        %1153 = vrot.lane.b32.xlu0 %v707, 96
        %v1154 = vpop.permute.xlu0 %1153
        %1155 = vrot.lane.b32.xlu0 %v707, 32
        %v1156 = vpop.permute.xlu0 %1155
        %v1158 = vsel %vm712, %v1154, 0
        %v1161 = vsel %vm712, %v1156, 0
        %1163 = vmatprep.subr.bf16.mxu0 0
        %1164 = vmatpush1.bf16.xpose.msra.mxu0 %v1161
        %1165 = vmatprep.subr.bf16.mxu0 0
        %1166 = vmatpush1.bf16.xpose.msra.mxu0 0
        %1167 = vmatprep.subr.bf16.mxu0 0
        %1168 = vmatpush1.bf16.xpose.msra.mxu0 0
        %1169 = vmatprep.subr.bf16.mxu0 0
        %1170 = vmatpush1.bf16.xpose.msra.mxu0 0
        %1171 = vmatprep.subr.bf16.mxu0 0
        %1172 = vmatpush1.bf16.xpose.msra.mxu0 0
        %1173 = vmatprep.subr.bf16.mxu0 0
        %1174 = vmatpush1.bf16.xpose.msra.mxu0 0
        %1175 = vmatprep.subr.bf16.mxu0 0
        %1176 = vmatpush1.bf16.xpose.msra.mxu0 0
        %1177 = vmatprep.subr.bf16.mxu0 0
        %1178 = vmatpush1.bf16.xpose.msra.mxu0 0
        %1179 = vmatprep.subr.bf16.mxu0 0
        %1180 = vmatpush1.bf16.xpose.msra.mxu0 0
        %1181 = vmatprep.subr.bf16.mxu0 0
        %1182 = vmatpush1.bf16.xpose.msra.mxu0 0
        %1183 = vmatprep.subr.bf16.mxu0 0
        %1184 = vmatpush1.bf16.xpose.msra.mxu0 0
        %1185 = vmatprep.subr.bf16.mxu0 0
        %1186 = vmatpush1.bf16.xpose.msra.mxu0 0
        %1187 = vmatprep.subr.bf16.mxu0 0
        %1188 = vmatpush1.bf16.xpose.msra.mxu0 0
        %1189 = vmatprep.subr.bf16.mxu0 0
        %1190 = vmatpush1.bf16.xpose.msra.mxu0 0
        %1191 = vmatprep.subr.bf16.mxu0 0
        %1192 = vmatpush1.bf16.xpose.msra.mxu0 0
        %1193 = vmatprep.subr.bf16.mxu0 0
        %1194 = vmatpush1.bf16.xpose.msra.mxu0 0
        %1195 = vmatprep.mubr.bf16.mxu0 0
        %1196 = vmatmul.mubr.bf16.gmra.mrb[0].mxu0 %v1158
        %v1197 = vpop.f32.mrb[0].mxu0
        %v1198 = vadd.f32 %v580, %v1197
        %v1199 = vpop.f32.mrb[0].mxu0
        %v1200 = vpop.f32.mrb[0].mxu0
        %v1201 = vpop.f32.mrb[0].mxu0
        %1202 = vdwg.mxu0
        %v1203 = vsel %vm712, %v1198, -inf
        %1204 = vmax.xlane.f32.xlu0 %v1203
        %v1205 = vpop.xlane.xlu0 %1204
        %v1206 = vsub.f32 %v1198, %v1205
        %v1207 = vmul.f32 %v1206, 1.442695
        %v1208 = vpow.pop %v1207
        %v1209 = vsel %vm712, %v1208, 0.0
        %1210 = vadd.xlane.f32.xlu0 %v1209
        %v1211 = vpop.xlane.xlu0 %1210
        %v1212 = vrcp.pop %v1211
        %v1213 = vmul.f32 %v1208, %v1212
        %v1214 = vpack.c.bf16 %v1213, %v1213
        %1215 = vrot.lane.b32.xlu0 %v708, 96
        %v1216 = vpop.permute.xlu0 %1215
        %v1218 = vsel %vm712, %v1214, 0
        %v1221 = vsel %vm774, %v1216, 0
        %1223 = vmatprep.subr.bf16.mxu0 0
        %1224 = vmatpush1.bf16.msra.mxu0 %v1221
        %1225 = vmatprep.subr.bf16.mxu0 0
        %1226 = vmatpush1.bf16.msra.mxu0 0
        %1227 = vmatprep.subr.bf16.mxu0 0
        %1228 = vmatpush1.bf16.msra.mxu0 0
        %1229 = vmatprep.subr.bf16.mxu0 0
        %1230 = vmatpush1.bf16.msra.mxu0 0
        %1231 = vmatprep.subr.bf16.mxu0 0
        %1232 = vmatpush1.bf16.msra.mxu0 0
        %1233 = vmatprep.subr.bf16.mxu0 0
        %1234 = vmatpush1.bf16.msra.mxu0 0
        %1235 = vmatprep.subr.bf16.mxu0 0
        %1236 = vmatpush1.bf16.msra.mxu0 0
        %1237 = vmatprep.subr.bf16.mxu0 0
        %1238 = vmatpush1.bf16.msra.mxu0 0
        %1239 = vmatprep.subr.bf16.mxu0 0
        %1240 = vmatpush1.bf16.msra.mxu0 0
        %1241 = vmatprep.subr.bf16.mxu0 0
        %1242 = vmatpush1.bf16.msra.mxu0 0
        %1243 = vmatprep.subr.bf16.mxu0 0
        %1244 = vmatpush1.bf16.msra.mxu0 0
        %1245 = vmatprep.subr.bf16.mxu0 0
        %1246 = vmatpush1.bf16.msra.mxu0 0
        %1247 = vmatprep.subr.bf16.mxu0 0
        %1248 = vmatpush1.bf16.msra.mxu0 0
        %1249 = vmatprep.subr.bf16.mxu0 0
        %1250 = vmatpush1.bf16.msra.mxu0 0
        %1251 = vmatprep.subr.bf16.mxu0 0
        %1252 = vmatpush1.bf16.msra.mxu0 0
        %1253 = vmatprep.subr.bf16.mxu0 0
        %1254 = vmatpush1.bf16.msra.mxu0 0
        %1255 = vmatprep.mubr.bf16.mxu0 0
        %1256 = vmatmul.mubr.bf16.gmra.mrb[0].mxu0 %v1218
        %v1257 = vpop.f32.mrb[0].mxu0
        %v1258 = vadd.f32 0.0, %v1257
        %v1259 = vpop.f32.mrb[0].mxu0
        %v1260 = vpop.f32.mrb[0].mxu0
        %v1261 = vpop.f32.mrb[0].mxu0
        %1262 = vdwg.mxu0
        %v1263 = vpack.c.bf16 %v1258, %v1258
        %1264 = vrot.lane.b32.xlu0 %v707, 88
        %v1265 = vpop.permute.xlu0 %1264
        %1266 = vrot.lane.b32.xlu0 %v707, 24
        %v1267 = vpop.permute.xlu0 %1266
        %v1269 = vsel %vm712, %v1265, 0
        %v1272 = vsel %vm712, %v1267, 0
        %1274 = vmatprep.subr.bf16.mxu0 0
        %1275 = vmatpush1.bf16.xpose.msra.mxu0 %v1272
        %1276 = vmatprep.subr.bf16.mxu0 0
        %1277 = vmatpush1.bf16.xpose.msra.mxu0 0
        %1278 = vmatprep.subr.bf16.mxu0 0
        %1279 = vmatpush1.bf16.xpose.msra.mxu0 0
        %1280 = vmatprep.subr.bf16.mxu0 0
        %1281 = vmatpush1.bf16.xpose.msra.mxu0 0
        %1282 = vmatprep.subr.bf16.mxu0 0
        %1283 = vmatpush1.bf16.xpose.msra.mxu0 0
        %1284 = vmatprep.subr.bf16.mxu0 0
        %1285 = vmatpush1.bf16.xpose.msra.mxu0 0
        %1286 = vmatprep.subr.bf16.mxu0 0
        %1287 = vmatpush1.bf16.xpose.msra.mxu0 0
        %1288 = vmatprep.subr.bf16.mxu0 0
        %1289 = vmatpush1.bf16.xpose.msra.mxu0 0
        %1290 = vmatprep.subr.bf16.mxu0 0
        %1291 = vmatpush1.bf16.xpose.msra.mxu0 0
        %1292 = vmatprep.subr.bf16.mxu0 0
        %1293 = vmatpush1.bf16.xpose.msra.mxu0 0
        %1294 = vmatprep.subr.bf16.mxu0 0
        %1295 = vmatpush1.bf16.xpose.msra.mxu0 0
        %1296 = vmatprep.subr.bf16.mxu0 0
        %1297 = vmatpush1.bf16.xpose.msra.mxu0 0
        %1298 = vmatprep.subr.bf16.mxu0 0
        %1299 = vmatpush1.bf16.xpose.msra.mxu0 0
        %1300 = vmatprep.subr.bf16.mxu0 0
        %1301 = vmatpush1.bf16.xpose.msra.mxu0 0
        %1302 = vmatprep.subr.bf16.mxu0 0
        %1303 = vmatpush1.bf16.xpose.msra.mxu0 0
        %1304 = vmatprep.subr.bf16.mxu0 0
        %1305 = vmatpush1.bf16.xpose.msra.mxu0 0
        %1306 = vmatprep.mubr.bf16.mxu0 0
        %1307 = vmatmul.mubr.bf16.gmra.mrb[0].mxu0 %v1269
        %v1308 = vpop.f32.mrb[0].mxu0
        %v1309 = vadd.f32 %v580, %v1308
        %v1310 = vpop.f32.mrb[0].mxu0
        %v1311 = vpop.f32.mrb[0].mxu0
        %v1312 = vpop.f32.mrb[0].mxu0
        %1313 = vdwg.mxu0
        %v1314 = vsel %vm712, %v1309, -inf
        %1315 = vmax.xlane.f32.xlu0 %v1314
        %v1316 = vpop.xlane.xlu0 %1315
        %v1317 = vsub.f32 %v1309, %v1316
        %v1318 = vmul.f32 %v1317, 1.442695
        %v1319 = vpow.pop %v1318
        %v1320 = vsel %vm712, %v1319, 0.0
        %1321 = vadd.xlane.f32.xlu0 %v1320
        %v1322 = vpop.xlane.xlu0 %1321
        %v1323 = vrcp.pop %v1322
        %v1324 = vmul.f32 %v1319, %v1323
        %v1325 = vpack.c.bf16 %v1324, %v1324
        %1326 = vrot.lane.b32.xlu0 %v708, 88
        %v1327 = vpop.permute.xlu0 %1326
        %v1329 = vsel %vm712, %v1325, 0
        %v1332 = vsel %vm774, %v1327, 0
        %1334 = vmatprep.subr.bf16.mxu0 0
        %1335 = vmatpush1.bf16.msra.mxu0 %v1332
        %1336 = vmatprep.subr.bf16.mxu0 0
        %1337 = vmatpush1.bf16.msra.mxu0 0
        %1338 = vmatprep.subr.bf16.mxu0 0
        %1339 = vmatpush1.bf16.msra.mxu0 0
        %1340 = vmatprep.subr.bf16.mxu0 0
        %1341 = vmatpush1.bf16.msra.mxu0 0
        %1342 = vmatprep.subr.bf16.mxu0 0
        %1343 = vmatpush1.bf16.msra.mxu0 0
        %1344 = vmatprep.subr.bf16.mxu0 0
        %1345 = vmatpush1.bf16.msra.mxu0 0
        %1346 = vmatprep.subr.bf16.mxu0 0
        %1347 = vmatpush1.bf16.msra.mxu0 0
        %1348 = vmatprep.subr.bf16.mxu0 0
        %1349 = vmatpush1.bf16.msra.mxu0 0
        %1350 = vmatprep.subr.bf16.mxu0 0
        %1351 = vmatpush1.bf16.msra.mxu0 0
        %1352 = vmatprep.subr.bf16.mxu0 0
        %1353 = vmatpush1.bf16.msra.mxu0 0
        %1354 = vmatprep.subr.bf16.mxu0 0
        %1355 = vmatpush1.bf16.msra.mxu0 0
        %1356 = vmatprep.subr.bf16.mxu0 0
        %1357 = vmatpush1.bf16.msra.mxu0 0
        %1358 = vmatprep.subr.bf16.mxu0 0
        %1359 = vmatpush1.bf16.msra.mxu0 0
        %1360 = vmatprep.subr.bf16.mxu0 0
        %1361 = vmatpush1.bf16.msra.mxu0 0
        %1362 = vmatprep.subr.bf16.mxu0 0
        %1363 = vmatpush1.bf16.msra.mxu0 0
        %1364 = vmatprep.subr.bf16.mxu0 0
        %1365 = vmatpush1.bf16.msra.mxu0 0
        %1366 = vmatprep.mubr.bf16.mxu0 0
        %1367 = vmatmul.mubr.bf16.gmra.mrb[0].mxu0 %v1329
        %v1368 = vpop.f32.mrb[0].mxu0
        %v1369 = vadd.f32 0.0, %v1368
        %v1370 = vpop.f32.mrb[0].mxu0
        %v1371 = vpop.f32.mrb[0].mxu0
        %v1372 = vpop.f32.mrb[0].mxu0
        %1373 = vdwg.mxu0
        %v1374 = vpack.c.bf16 %v1369, %v1369
        %1375 = vrot.lane.b32.xlu0 %v707, 80
        %v1376 = vpop.permute.xlu0 %1375
        %1377 = vrot.lane.b32.xlu0 %v707, 16
        %v1378 = vpop.permute.xlu0 %1377
        %v1380 = vsel %vm712, %v1376, 0
        %v1383 = vsel %vm712, %v1378, 0
        %1385 = vmatprep.subr.bf16.mxu0 0
        %1386 = vmatpush1.bf16.xpose.msra.mxu0 %v1383
        %1387 = vmatprep.subr.bf16.mxu0 0
        %1388 = vmatpush1.bf16.xpose.msra.mxu0 0
        %1389 = vmatprep.subr.bf16.mxu0 0
        %1390 = vmatpush1.bf16.xpose.msra.mxu0 0
        %1391 = vmatprep.subr.bf16.mxu0 0
        %1392 = vmatpush1.bf16.xpose.msra.mxu0 0
        %1393 = vmatprep.subr.bf16.mxu0 0
        %1394 = vmatpush1.bf16.xpose.msra.mxu0 0
        %1395 = vmatprep.subr.bf16.mxu0 0
        %1396 = vmatpush1.bf16.xpose.msra.mxu0 0
        %1397 = vmatprep.subr.bf16.mxu0 0
        %1398 = vmatpush1.bf16.xpose.msra.mxu0 0
        %1399 = vmatprep.subr.bf16.mxu0 0
        %1400 = vmatpush1.bf16.xpose.msra.mxu0 0
        %1401 = vmatprep.subr.bf16.mxu0 0
        %1402 = vmatpush1.bf16.xpose.msra.mxu0 0
        %1403 = vmatprep.subr.bf16.mxu0 0
        %1404 = vmatpush1.bf16.xpose.msra.mxu0 0
        %1405 = vmatprep.subr.bf16.mxu0 0
        %1406 = vmatpush1.bf16.xpose.msra.mxu0 0
        %1407 = vmatprep.subr.bf16.mxu0 0
        %1408 = vmatpush1.bf16.xpose.msra.mxu0 0
        %1409 = vmatprep.subr.bf16.mxu0 0
        %1410 = vmatpush1.bf16.xpose.msra.mxu0 0
        %1411 = vmatprep.subr.bf16.mxu0 0
        %1412 = vmatpush1.bf16.xpose.msra.mxu0 0
        %1413 = vmatprep.subr.bf16.mxu0 0
        %1414 = vmatpush1.bf16.xpose.msra.mxu0 0
        %1415 = vmatprep.subr.bf16.mxu0 0
        %1416 = vmatpush1.bf16.xpose.msra.mxu0 0
        %1417 = vmatprep.mubr.bf16.mxu0 0
        %1418 = vmatmul.mubr.bf16.gmra.mrb[0].mxu0 %v1380
        %v1419 = vpop.f32.mrb[0].mxu0
        %v1420 = vadd.f32 %v580, %v1419
        %v1421 = vpop.f32.mrb[0].mxu0
        %v1422 = vpop.f32.mrb[0].mxu0
        %v1423 = vpop.f32.mrb[0].mxu0
        %1424 = vdwg.mxu0
        %v1425 = vsel %vm712, %v1420, -inf
        %1426 = vmax.xlane.f32.xlu0 %v1425
        %v1427 = vpop.xlane.xlu0 %1426
        %v1428 = vsub.f32 %v1420, %v1427
        %v1429 = vmul.f32 %v1428, 1.442695
        %v1430 = vpow.pop %v1429
        %v1431 = vsel %vm712, %v1430, 0.0
        %1432 = vadd.xlane.f32.xlu0 %v1431
        %v1433 = vpop.xlane.xlu0 %1432
        %v1434 = vrcp.pop %v1433
        %v1435 = vmul.f32 %v1430, %v1434
        %v1436 = vpack.c.bf16 %v1435, %v1435
        %1437 = vrot.lane.b32.xlu0 %v708, 80
        %v1438 = vpop.permute.xlu0 %1437
        %v1440 = vsel %vm712, %v1436, 0
        %v1443 = vsel %vm774, %v1438, 0
        %1445 = vmatprep.subr.bf16.mxu0 0
        %1446 = vmatpush1.bf16.msra.mxu0 %v1443
        %1447 = vmatprep.subr.bf16.mxu0 0
        %1448 = vmatpush1.bf16.msra.mxu0 0
        %1449 = vmatprep.subr.bf16.mxu0 0
        %1450 = vmatpush1.bf16.msra.mxu0 0
        %1451 = vmatprep.subr.bf16.mxu0 0
        %1452 = vmatpush1.bf16.msra.mxu0 0
        %1453 = vmatprep.subr.bf16.mxu0 0
        %1454 = vmatpush1.bf16.msra.mxu0 0
        %1455 = vmatprep.subr.bf16.mxu0 0
        %1456 = vmatpush1.bf16.msra.mxu0 0
        %1457 = vmatprep.subr.bf16.mxu0 0
        %1458 = vmatpush1.bf16.msra.mxu0 0
        %1459 = vmatprep.subr.bf16.mxu0 0
        %1460 = vmatpush1.bf16.msra.mxu0 0
        %1461 = vmatprep.subr.bf16.mxu0 0
        %1462 = vmatpush1.bf16.msra.mxu0 0
        %1463 = vmatprep.subr.bf16.mxu0 0
        %1464 = vmatpush1.bf16.msra.mxu0 0
        %1465 = vmatprep.subr.bf16.mxu0 0
        %1466 = vmatpush1.bf16.msra.mxu0 0
        %1467 = vmatprep.subr.bf16.mxu0 0
        %1468 = vmatpush1.bf16.msra.mxu0 0
        %1469 = vmatprep.subr.bf16.mxu0 0
        %1470 = vmatpush1.bf16.msra.mxu0 0
        %1471 = vmatprep.subr.bf16.mxu0 0
        %1472 = vmatpush1.bf16.msra.mxu0 0
        %1473 = vmatprep.subr.bf16.mxu0 0
        %1474 = vmatpush1.bf16.msra.mxu0 0
        %1475 = vmatprep.subr.bf16.mxu0 0
        %1476 = vmatpush1.bf16.msra.mxu0 0
        %1477 = vmatprep.mubr.bf16.mxu0 0
        %1478 = vmatmul.mubr.bf16.gmra.mrb[0].mxu0 %v1440
        %v1479 = vpop.f32.mrb[0].mxu0
        %v1480 = vadd.f32 0.0, %v1479
        %v1481 = vpop.f32.mrb[0].mxu0
        %v1482 = vpop.f32.mrb[0].mxu0
        %v1483 = vpop.f32.mrb[0].mxu0
        %1484 = vdwg.mxu0
        %v1485 = vpack.c.bf16 %v1480, %v1480
        %1486 = vrot.lane.b32.xlu0 %v707, 72
        %v1487 = vpop.permute.xlu0 %1486
        %1488 = vrot.lane.b32.xlu0 %v707, 8
        %v1489 = vpop.permute.xlu0 %1488
        %v1491 = vsel %vm712, %v1487, 0
        %v1494 = vsel %vm712, %v1489, 0
        %1496 = vmatprep.subr.bf16.mxu0 0
        %1497 = vmatpush1.bf16.xpose.msra.mxu0 %v1494
        %1498 = vmatprep.subr.bf16.mxu0 0
        %1499 = vmatpush1.bf16.xpose.msra.mxu0 0
        %1500 = vmatprep.subr.bf16.mxu0 0
        %1501 = vmatpush1.bf16.xpose.msra.mxu0 0
        %1502 = vmatprep.subr.bf16.mxu0 0
        %1503 = vmatpush1.bf16.xpose.msra.mxu0 0
        %1504 = vmatprep.subr.bf16.mxu0 0
        %1505 = vmatpush1.bf16.xpose.msra.mxu0 0
        %1506 = vmatprep.subr.bf16.mxu0 0
        %1507 = vmatpush1.bf16.xpose.msra.mxu0 0
        %1508 = vmatprep.subr.bf16.mxu0 0
        %1509 = vmatpush1.bf16.xpose.msra.mxu0 0
        %1510 = vmatprep.subr.bf16.mxu0 0
        %1511 = vmatpush1.bf16.xpose.msra.mxu0 0
        %1512 = vmatprep.subr.bf16.mxu0 0
        %1513 = vmatpush1.bf16.xpose.msra.mxu0 0
        %1514 = vmatprep.subr.bf16.mxu0 0
        %1515 = vmatpush1.bf16.xpose.msra.mxu0 0
        %1516 = vmatprep.subr.bf16.mxu0 0
        %1517 = vmatpush1.bf16.xpose.msra.mxu0 0
        %1518 = vmatprep.subr.bf16.mxu0 0
        %1519 = vmatpush1.bf16.xpose.msra.mxu0 0
        %1520 = vmatprep.subr.bf16.mxu0 0
        %1521 = vmatpush1.bf16.xpose.msra.mxu0 0
        %1522 = vmatprep.subr.bf16.mxu0 0
        %1523 = vmatpush1.bf16.xpose.msra.mxu0 0
        %1524 = vmatprep.subr.bf16.mxu0 0
        %1525 = vmatpush1.bf16.xpose.msra.mxu0 0
        %1526 = vmatprep.subr.bf16.mxu0 0
        %1527 = vmatpush1.bf16.xpose.msra.mxu0 0
        %1528 = vmatprep.mubr.bf16.mxu0 0
        %1529 = vmatmul.mubr.bf16.gmra.mrb[0].mxu0 %v1491
        %v1530 = vpop.f32.mrb[0].mxu0
        %v1531 = vadd.f32 %v580, %v1530
        %v1532 = vpop.f32.mrb[0].mxu0
        %v1533 = vpop.f32.mrb[0].mxu0
        %v1534 = vpop.f32.mrb[0].mxu0
        %1535 = vdwg.mxu0
        %v1536 = vsel %vm712, %v1531, -inf
        %1537 = vmax.xlane.f32.xlu0 %v1536
        %v1538 = vpop.xlane.xlu0 %1537
        %v1539 = vsub.f32 %v1531, %v1538
        %v1540 = vmul.f32 %v1539, 1.442695
        %v1541 = vpow.pop %v1540
        %v1542 = vsel %vm712, %v1541, 0.0
        %1543 = vadd.xlane.f32.xlu0 %v1542
        %v1544 = vpop.xlane.xlu0 %1543
        %v1545 = vrcp.pop %v1544
        %v1546 = vmul.f32 %v1541, %v1545
        %v1547 = vpack.c.bf16 %v1546, %v1546
        %1548 = vrot.lane.b32.xlu0 %v708, 72
        %v1549 = vpop.permute.xlu0 %1548
        %v1551 = vsel %vm712, %v1547, 0
        %v1554 = vsel %vm774, %v1549, 0
        %1556 = vmatprep.subr.bf16.mxu0 0
        %1557 = vmatpush1.bf16.msra.mxu0 %v1554
        %1558 = vmatprep.subr.bf16.mxu0 0
        %1559 = vmatpush1.bf16.msra.mxu0 0
        %1560 = vmatprep.subr.bf16.mxu0 0
        %1561 = vmatpush1.bf16.msra.mxu0 0
        %1562 = vmatprep.subr.bf16.mxu0 0
        %1563 = vmatpush1.bf16.msra.mxu0 0
        %1564 = vmatprep.subr.bf16.mxu0 0
        %1565 = vmatpush1.bf16.msra.mxu0 0
        %1566 = vmatprep.subr.bf16.mxu0 0
        %1567 = vmatpush1.bf16.msra.mxu0 0
        %1568 = vmatprep.subr.bf16.mxu0 0
        %1569 = vmatpush1.bf16.msra.mxu0 0
        %1570 = vmatprep.subr.bf16.mxu0 0
        %1571 = vmatpush1.bf16.msra.mxu0 0
        %1572 = vmatprep.subr.bf16.mxu0 0
        %1573 = vmatpush1.bf16.msra.mxu0 0
        %1574 = vmatprep.subr.bf16.mxu0 0
        %1575 = vmatpush1.bf16.msra.mxu0 0
        %1576 = vmatprep.subr.bf16.mxu0 0
        %1577 = vmatpush1.bf16.msra.mxu0 0
        %1578 = vmatprep.subr.bf16.mxu0 0
        %1579 = vmatpush1.bf16.msra.mxu0 0
        %1580 = vmatprep.subr.bf16.mxu0 0
        %1581 = vmatpush1.bf16.msra.mxu0 0
        %1582 = vmatprep.subr.bf16.mxu0 0
        %1583 = vmatpush1.bf16.msra.mxu0 0
        %1584 = vmatprep.subr.bf16.mxu0 0
        %1585 = vmatpush1.bf16.msra.mxu0 0
        %1586 = vmatprep.subr.bf16.mxu0 0
        %1587 = vmatpush1.bf16.msra.mxu0 0
        %1588 = vmatprep.mubr.bf16.mxu0 0
        %1589 = vmatmul.mubr.bf16.gmra.mrb[0].mxu0 %v1551
        %v1590 = vpop.f32.mrb[0].mxu0
        %v1591 = vadd.f32 0.0, %v1590
        %v1592 = vpop.f32.mrb[0].mxu0
        %v1593 = vpop.f32.mrb[0].mxu0
        %v1594 = vpop.f32.mrb[0].mxu0
        %1595 = vdwg.mxu0
        %v1596 = vpack.c.bf16 %v1591, %v1591
        %1598 = vrot.lane.b32.xlu0 %v930, 8
        %v1599 = vpop.permute.xlu0 %1598
        %1601 = vrot.lane.b32.xlu0 %v1041, 16
        %v1602 = vpop.permute.xlu0 %1601
        %1604 = vrot.lane.b32.xlu0 %v1152, 24
        %v1605 = vpop.permute.xlu0 %1604
        %1607 = vrot.lane.b32.xlu0 %v1263, 32
        %v1608 = vpop.permute.xlu0 %1607
        %1610 = vrot.lane.b32.xlu0 %v1374, 40
        %v1611 = vpop.permute.xlu0 %1610
        %1613 = vrot.lane.b32.xlu0 %v1485, 48
        %v1614 = vpop.permute.xlu0 %1613
        %1616 = vrot.lane.b32.xlu0 %v1596, 56
        %v1617 = vpop.permute.xlu0 %1616
        %v1620 = vsel %vm712, %v818, %v1599
        %vm1621 = vcmask 130048
        %v1623 = vsel %vm1621, %v1620, %v1602
        %vm1624 = vcmask 195584
        %v1626 = vsel %vm1624, %v1623, %v1605
        %vm1627 = vcmask 261120
        %v1629 = vsel %vm1627, %v1626, %v1608
        %vm1630 = vcmask 326656
        %v1632 = vsel %vm1630, %v1629, %v1611
        %vm1633 = vcmask 392192
        %v1635 = vsel %vm1633, %v1632, %v1614
        %vm1636 = vcmask 457728
        %v1638 = vsel %vm1636, %v1635, %v1617
        %v1639 = vld [vmem:[%s542] sm:$0xf]
        %v1640 = vld [vmem:[%s542 + $0x4] sm:$0xf]
        %v1641 = vld [vmem:[%s542 + $0x8] sm:$0xf]
        %v1642 = vld [vmem:[%s542 + $0xc] sm:$0xf]
        %v1643 = vld [vmem:[%s542 + $0x10] sm:$0xf]
        %v1644 = vld [vmem:[%s542 + $0x14] sm:$0xf]
        %v1645 = vld [vmem:[%s542 + $0x18] sm:$0xf]
        %v1646 = vld [vmem:[%s542 + $0x1c] sm:$0xf]
        %v1655 = vunpack.c.l.b16 %v1639
        %v1656 = vunpack.c.l.b16 %v1640
        %v1657 = vunpack.c.l.b16 %v1641
        %v1658 = vunpack.c.l.b16 %v1642
        %v1659 = vunpack.c.l.b16 %v1643
        %v1660 = vunpack.c.l.b16 %v1644
        %v1661 = vunpack.c.l.b16 %v1645
        %v1662 = vunpack.c.l.b16 %v1646
        %v1663 = vpack.c.b16 %v1656, %v1655
        %v1664 = vpack.c.b16 %v1658, %v1657
        %v1665 = vpack.c.b16 %v1660, %v1659
        %v1666 = vpack.c.b16 %v1662, %v1661
        %v1671 = vsel %vm585, %v1638, 0
        %1673 = vmatprep.subr.bf16.mxu0 0
        %1674 = vmatpush1.bf16.msra.mxu0 %v1663
        %1675 = vmatprep.subr.bf16.mxu0 0
        %1676 = vmatpush1.bf16.msra.mxu0 %v1664
        %1677 = vmatprep.subr.bf16.mxu0 0
        %1678 = vmatpush1.bf16.msra.mxu0 %v1665
        %1679 = vmatprep.subr.bf16.mxu0 0
        %1680 = vmatpush1.bf16.msra.mxu0 %v1666
        %1681 = vmatprep.subr.bf16.mxu0 0
        %1682 = vmatpush1.bf16.msra.mxu0 0
        %1683 = vmatprep.subr.bf16.mxu0 0
        %1684 = vmatpush1.bf16.msra.mxu0 0
        %1685 = vmatprep.subr.bf16.mxu0 0
        %1686 = vmatpush1.bf16.msra.mxu0 0
        %1687 = vmatprep.subr.bf16.mxu0 0
        %1688 = vmatpush1.bf16.msra.mxu0 0
        %1689 = vmatprep.subr.bf16.mxu0 0
        %1690 = vmatpush1.bf16.msra.mxu0 0
        %1691 = vmatprep.subr.bf16.mxu0 0
        %1692 = vmatpush1.bf16.msra.mxu0 0
        %1693 = vmatprep.subr.bf16.mxu0 0
        %1694 = vmatpush1.bf16.msra.mxu0 0
        %1695 = vmatprep.subr.bf16.mxu0 0
        %1696 = vmatpush1.bf16.msra.mxu0 0
        %1697 = vmatprep.subr.bf16.mxu0 0
        %1698 = vmatpush1.bf16.msra.mxu0 0
        %1699 = vmatprep.subr.bf16.mxu0 0
        %1700 = vmatpush1.bf16.msra.mxu0 0
        %1701 = vmatprep.subr.bf16.mxu0 0
        %1702 = vmatpush1.bf16.msra.mxu0 0
        %1703 = vmatprep.subr.bf16.mxu0 0
        %1704 = vmatpush1.bf16.msra.mxu0 0
        %1705 = vmatprep.mubr.bf16.mxu0 0
        %1706 = vmatmul.mubr.bf16.gmra.mrb[0].mxu0 %v1671
        %v1707 = vpop.f32.mrb[0].mxu0
        %v1708 = vadd.f32 0.0, %v1707
        %v1709 = vpop.f32.mrb[0].mxu0
        %v1710 = vpop.f32.mrb[0].mxu0
        %v1711 = vpop.f32.mrb[0].mxu0
        %1712 = vdwg.mxu0
        %v1713 = vadd.f32 %v579, %v1708
        %v1714 = vld [vmem:[%s545] sm:$0x1]
        %v1716 = vlaneseq
        %v1717 = vshrl.u32 %v1716, 7
        %v1718 = vsub.s32 0, %v1717
        %v1719 = vrot.slane %v1714, %v1718
        %v1721 = vadd.f32 %v1713, %v1719
        %v1722 = vsel %vm585, %v1721, 0.0
        %1723 = vadd.xlane.f32.xlu0 %v1722
        %v1724 = vpop.xlane.xlu0 %1723
        %v1725 = vmul.f32 %v1724, %v589
        %v1726 = vsub.f32 %v1721, %v1725
        %v1727 = vmul.f32 %v1726, %v1726
        %v1728 = vsel %vm585, %v1727, 0.0
        %1729 = vadd.xlane.f32.xlu0 %v1728
        %v1730 = vpop.xlane.xlu0 %1729
        %v1731 = vmul.f32 %v1730, %v589
        %v1732 = vadd.f32 %v1731, 1e-05
        %v1733 = vrsqrt.pop %v1732
        %v1734 = vmul.f32 %v1726, %v1733
        %v1736 = vlaneseq
        %v1737 = vshrl.u32 %v1736, 7
        %v1738 = vsub.s32 0, %v1737
        %v1739 = vrot.slane %v583, %v1738
        %v1741 = vmul.f32 %v1734, %v1739
        %v1743 = vlaneseq
        %v1744 = vshrl.u32 %v1743, 7
        %v1745 = vsub.s32 0, %v1744
        %v1746 = vrot.slane %v584, %v1745
        %v1748 = vadd.f32 %v1741, %v1746
        %v1749 = vpack.c.bf16 %v1748, %v1748
        %v1750 = vld [vmem:[%s550] sm:$0xff]
        %v1751 = vld [vmem:[%s550 + $0x8] sm:$0xff]
        %v1752 = vld [vmem:[%s550 + $0x10] sm:$0xff]
        %v1753 = vld [vmem:[%s550 + $0x18] sm:$0xff]
        %v1754 = vld [vmem:[%s550 + $0x20] sm:$0xff]
        %v1755 = vld [vmem:[%s550 + $0x28] sm:$0xff]
        %v1756 = vld [vmem:[%s550 + $0x30] sm:$0xff]
        %v1757 = vld [vmem:[%s550 + $0x38] sm:$0xff]
        %v1758 = vld [vmem:[%s554] sm:$0x3]
        %v1760 = vlaneseq
        %v1761 = vshrl.u32 %v1760, 7
        %v1762 = vsub.s32 0, %v1761
        %v1763 = vrot.slane %v1758, %v1762
        %v1764 = vlaneseq
        %v1765 = vshrl.u32 %v1764, 7
        %v1766 = vsub.s32 1, %v1765
        %v1767 = vrot.slane %v1758, %v1766
        %v1778 = vunpack.c.l.b16 %v1750
        %v1779 = vunpack.c.h.b16 %v1750
        %v1780 = vunpack.c.l.b16 %v1751
        %v1781 = vunpack.c.h.b16 %v1751
        %v1782 = vunpack.c.l.b16 %v1752
        %v1783 = vunpack.c.h.b16 %v1752
        %v1784 = vunpack.c.l.b16 %v1753
        %v1785 = vunpack.c.h.b16 %v1753
        %v1786 = vunpack.c.l.b16 %v1754
        %v1787 = vunpack.c.h.b16 %v1754
        %v1788 = vunpack.c.l.b16 %v1755
        %v1789 = vunpack.c.h.b16 %v1755
        %v1790 = vunpack.c.l.b16 %v1756
        %v1791 = vunpack.c.h.b16 %v1756
        %v1792 = vunpack.c.l.b16 %v1757
        %v1793 = vunpack.c.h.b16 %v1757
        %v1794 = vpack.c.b16 %v1780, %v1778
        %v1795 = vpack.c.b16 %v1781, %v1779
        %v1796 = vpack.c.b16 %v1784, %v1782
        %v1797 = vpack.c.b16 %v1785, %v1783
        %v1798 = vpack.c.b16 %v1788, %v1786
        %v1799 = vpack.c.b16 %v1789, %v1787
        %v1800 = vpack.c.b16 %v1792, %v1790
        %v1801 = vpack.c.b16 %v1793, %v1791
        %v1811 = vsel %vm585, %v1749, 0
        %1813 = vmatprep.subr.bf16.mxu0 %v1795
        %1814 = vmatpush1.bf16.msra.mxu0 %v1794
        %1815 = vmatprep.subr.bf16.mxu0 %v1797
        %1816 = vmatpush1.bf16.msra.mxu0 %v1796
        %1817 = vmatprep.subr.bf16.mxu0 %v1799
        %1818 = vmatpush1.bf16.msra.mxu0 %v1798
        %1819 = vmatprep.subr.bf16.mxu0 %v1801
        %1820 = vmatpush1.bf16.msra.mxu0 %v1800
        %1821 = vmatprep.subr.bf16.mxu0 0
        %1822 = vmatpush1.bf16.msra.mxu0 0
        %1823 = vmatprep.subr.bf16.mxu0 0
        %1824 = vmatpush1.bf16.msra.mxu0 0
        %1825 = vmatprep.subr.bf16.mxu0 0
        %1826 = vmatpush1.bf16.msra.mxu0 0
        %1827 = vmatprep.subr.bf16.mxu0 0
        %1828 = vmatpush1.bf16.msra.mxu0 0
        %1829 = vmatprep.subr.bf16.mxu0 0
        %1830 = vmatpush1.bf16.msra.mxu0 0
        %1831 = vmatprep.subr.bf16.mxu0 0
        %1832 = vmatpush1.bf16.msra.mxu0 0
        %1833 = vmatprep.subr.bf16.mxu0 0
        %1834 = vmatpush1.bf16.msra.mxu0 0
        %1835 = vmatprep.subr.bf16.mxu0 0
        %1836 = vmatpush1.bf16.msra.mxu0 0
        %1837 = vmatprep.subr.bf16.mxu0 0
        %1838 = vmatpush1.bf16.msra.mxu0 0
        %1839 = vmatprep.subr.bf16.mxu0 0
        %1840 = vmatpush1.bf16.msra.mxu0 0
        %1841 = vmatprep.subr.bf16.mxu0 0
        %1842 = vmatpush1.bf16.msra.mxu0 0
        %1843 = vmatprep.subr.bf16.mxu0 0
        %1844 = vmatpush1.bf16.msra.mxu0 0
        %1845 = vmatprep.mubr.bf16.mxu0 0
        %1846 = vmatmul.mubr.bf16.gmra.mrb[0].mxu0 %v1811
        %v1847 = vpop.f32.mrb[0].mxu0
        %v1848 = vadd.f32 %v1763, %v1847
        %v1849 = vpop.f32.mrb[0].mxu0
        %v1850 = vadd.f32 %v1767, %v1849
        %v1851 = vpop.f32.mrb[0].mxu0
        %v1852 = vpop.f32.mrb[0].mxu0
        %1853 = vdwg.mxu0
        %v1854 = vmax.f32 %v1848, 0.0
        %v1855 = vmax.f32 %v1850, 0.0
        %v1856 = vpack.c.bf16 %v1854, %v1854
        %v1857 = vpack.c.bf16 %v1855, %v1855
        %v1858 = vld [vmem:[%s559] sm:$0xf]
        %v1859 = vld [vmem:[%s559 + $0x4] sm:$0xf]
        %v1860 = vld [vmem:[%s559 + $0x8] sm:$0xf]
        %v1861 = vld [vmem:[%s559 + $0xc] sm:$0xf]
        %v1862 = vld [vmem:[%s559 + $0x10] sm:$0xf]
        %v1863 = vld [vmem:[%s559 + $0x14] sm:$0xf]
        %v1864 = vld [vmem:[%s559 + $0x18] sm:$0xf]
        %v1865 = vld [vmem:[%s559 + $0x1c] sm:$0xf]
        %v1866 = vld [vmem:[%s559 + $0x20] sm:$0xf]
        %v1867 = vld [vmem:[%s559 + $0x24] sm:$0xf]
        %v1868 = vld [vmem:[%s559 + $0x28] sm:$0xf]
        %v1869 = vld [vmem:[%s559 + $0x2c] sm:$0xf]
        %v1870 = vld [vmem:[%s559 + $0x30] sm:$0xf]
        %v1871 = vld [vmem:[%s559 + $0x34] sm:$0xf]
        %v1872 = vld [vmem:[%s559 + $0x38] sm:$0xf]
        %v1873 = vld [vmem:[%s559 + $0x3c] sm:$0xf]
        %v1874 = vld [vmem:[%s559 + $0x40] sm:$0xf]
        %v1875 = vld [vmem:[%s559 + $0x44] sm:$0xf]
        %v1876 = vld [vmem:[%s559 + $0x48] sm:$0xf]
        %v1877 = vld [vmem:[%s559 + $0x4c] sm:$0xf]
        %v1878 = vld [vmem:[%s559 + $0x50] sm:$0xf]
        %v1879 = vld [vmem:[%s559 + $0x54] sm:$0xf]
        %v1880 = vld [vmem:[%s559 + $0x58] sm:$0xf]
        %v1881 = vld [vmem:[%s559 + $0x5c] sm:$0xf]
        %v1882 = vld [vmem:[%s559 + $0x60] sm:$0xf]
        %v1883 = vld [vmem:[%s559 + $0x64] sm:$0xf]
        %v1884 = vld [vmem:[%s559 + $0x68] sm:$0xf]
        %v1885 = vld [vmem:[%s559 + $0x6c] sm:$0xf]
        %v1886 = vld [vmem:[%s559 + $0x70] sm:$0xf]
        %v1887 = vld [vmem:[%s559 + $0x74] sm:$0xf]
        %v1888 = vld [vmem:[%s559 + $0x78] sm:$0xf]
        %v1889 = vld [vmem:[%s559 + $0x7c] sm:$0xf]
        %v1922 = vunpack.c.l.b16 %v1858
        %v1923 = vunpack.c.l.b16 %v1859
        %v1924 = vunpack.c.l.b16 %v1860
        %v1925 = vunpack.c.l.b16 %v1861
        %v1926 = vunpack.c.l.b16 %v1862
        %v1927 = vunpack.c.l.b16 %v1863
        %v1928 = vunpack.c.l.b16 %v1864
        %v1929 = vunpack.c.l.b16 %v1865
        %v1930 = vunpack.c.l.b16 %v1866
        %v1931 = vunpack.c.l.b16 %v1867
        %v1932 = vunpack.c.l.b16 %v1868
        %v1933 = vunpack.c.l.b16 %v1869
        %v1934 = vunpack.c.l.b16 %v1870
        %v1935 = vunpack.c.l.b16 %v1871
        %v1936 = vunpack.c.l.b16 %v1872
        %v1937 = vunpack.c.l.b16 %v1873
        %v1938 = vunpack.c.l.b16 %v1874
        %v1939 = vunpack.c.l.b16 %v1875
        %v1940 = vunpack.c.l.b16 %v1876
        %v1941 = vunpack.c.l.b16 %v1877
        %v1942 = vunpack.c.l.b16 %v1878
        %v1943 = vunpack.c.l.b16 %v1879
        %v1944 = vunpack.c.l.b16 %v1880
        %v1945 = vunpack.c.l.b16 %v1881
        %v1946 = vunpack.c.l.b16 %v1882
        %v1947 = vunpack.c.l.b16 %v1883
        %v1948 = vunpack.c.l.b16 %v1884
        %v1949 = vunpack.c.l.b16 %v1885
        %v1950 = vunpack.c.l.b16 %v1886
        %v1951 = vunpack.c.l.b16 %v1887
        %v1952 = vunpack.c.l.b16 %v1888
        %v1953 = vunpack.c.l.b16 %v1889
        %v1954 = vpack.c.b16 %v1923, %v1922
        %v1955 = vpack.c.b16 %v1925, %v1924
        %v1956 = vpack.c.b16 %v1927, %v1926
        %v1957 = vpack.c.b16 %v1929, %v1928
        %v1958 = vpack.c.b16 %v1931, %v1930
        %v1959 = vpack.c.b16 %v1933, %v1932
        %v1960 = vpack.c.b16 %v1935, %v1934
        %v1961 = vpack.c.b16 %v1937, %v1936
        %v1962 = vpack.c.b16 %v1939, %v1938
        %v1963 = vpack.c.b16 %v1941, %v1940
        %v1964 = vpack.c.b16 %v1943, %v1942
        %v1965 = vpack.c.b16 %v1945, %v1944
        %v1966 = vpack.c.b16 %v1947, %v1946
        %v1967 = vpack.c.b16 %v1949, %v1948
        %v1968 = vpack.c.b16 %v1951, %v1950
        %v1969 = vpack.c.b16 %v1953, %v1952
        %1986 = vmatprep.subr.bf16.mxu0 0
        %1987 = vmatpush1.bf16.msra.mxu0 %v1954
        %1988 = vmatprep.subr.bf16.mxu0 0
        %1989 = vmatpush1.bf16.msra.mxu0 %v1955
        %1990 = vmatprep.subr.bf16.mxu0 0
        %1991 = vmatpush1.bf16.msra.mxu0 %v1956
        %1992 = vmatprep.subr.bf16.mxu0 0
        %1993 = vmatpush1.bf16.msra.mxu0 %v1957
        %1994 = vmatprep.subr.bf16.mxu0 0
        %1995 = vmatpush1.bf16.msra.mxu0 %v1958
        %1996 = vmatprep.subr.bf16.mxu0 0
        %1997 = vmatpush1.bf16.msra.mxu0 %v1959
        %1998 = vmatprep.subr.bf16.mxu0 0
        %1999 = vmatpush1.bf16.msra.mxu0 %v1960
        %2000 = vmatprep.subr.bf16.mxu0 0
        %2001 = vmatpush1.bf16.msra.mxu0 %v1961
        %2002 = vmatprep.subr.bf16.mxu0 0
        %2003 = vmatpush1.bf16.msra.mxu0 %v1962
        %2004 = vmatprep.subr.bf16.mxu0 0
        %2005 = vmatpush1.bf16.msra.mxu0 %v1963
        %2006 = vmatprep.subr.bf16.mxu0 0
        %2007 = vmatpush1.bf16.msra.mxu0 %v1964
        %2008 = vmatprep.subr.bf16.mxu0 0
        %2009 = vmatpush1.bf16.msra.mxu0 %v1965
        %2010 = vmatprep.subr.bf16.mxu0 0
        %2011 = vmatpush1.bf16.msra.mxu0 %v1966
        %2012 = vmatprep.subr.bf16.mxu0 0
        %2013 = vmatpush1.bf16.msra.mxu0 %v1967
        %2014 = vmatprep.subr.bf16.mxu0 0
        %2015 = vmatpush1.bf16.msra.mxu0 %v1968
        %2016 = vmatprep.subr.bf16.mxu0 0
        %2017 = vmatpush1.bf16.msra.mxu0 %v1969
        %2018 = vmatprep.mubr.bf16.mxu0 %v1857
        %2019 = vmatmul.mubr.bf16.gmra.mrb[0].mxu0 %v1856
        %v2020 = vpop.f32.mrb[0].mxu0
        %v2021 = vadd.f32 0.0, %v2020
        %v2022 = vpop.f32.mrb[0].mxu0
        %v2023 = vpop.f32.mrb[0].mxu0
        %v2024 = vpop.f32.mrb[0].mxu0
        %2025 = vdwg.mxu0
        %v2026 = vadd.f32 %v1721, %v2021
        %v2027 = vld [vmem:[%s562] sm:$0x1]
        %v2029 = vlaneseq
        %v2030 = vshrl.u32 %v2029, 7
        %v2031 = vsub.s32 0, %v2030
        %v2032 = vrot.slane %v2027, %v2031
        %v2034 = vadd.f32 %v2026, %v2032
        %2035 = vst.msk [vmem:[#allocation2] sm:$0xff] %vm585, %v2034
        %p2036 = scmp.eq.s32.totalorder %s31, 5
        // Predicated region
        $region73: #{transformer_forward.1} parent=67 // pred_check
          %p2037 = pneg %p2036
        $region74: #{transformer_forward.1} parent=67 // pred_check_branch
          %2039 = sbr.rel (%p2037) target = $region76
        $region75: #{transformer_forward.1} parent=67 // pred_region
          %v2040 = vld [vmem:[%s9] sm:$0x1]
          %s2041 = scalar_lea.vmem %s9, 1
          %v2042 = vld [vmem:[%s2041] sm:$0x1]
          %v2043 = vsel %vm585, %v2034, 0.0
          %2044 = vadd.xlane.f32.xlu0 %v2043
          %v2045 = vpop.xlane.xlu0 %2044
          %v2046 = vmul.f32 %v2045, %v589
          %v2047 = vsub.f32 %v2034, %v2046
          %v2048 = vmul.f32 %v2047, %v2047
          %v2049 = vsel %vm585, %v2048, 0.0
          %2050 = vadd.xlane.f32.xlu0 %v2049
          %v2051 = vpop.xlane.xlu0 %2050
          %v2052 = vmul.f32 %v2051, %v589
          %v2053 = vadd.f32 %v2052, 1e-05
          %v2054 = vrsqrt.pop %v2053
          %v2055 = vmul.f32 %v2047, %v2054
          %v2057 = vlaneseq
          %v2058 = vshrl.u32 %v2057, 7
          %v2059 = vsub.s32 0, %v2058
          %v2060 = vrot.slane %v2040, %v2059
          %v2062 = vmul.f32 %v2055, %v2060
          %v2064 = vlaneseq
          %v2065 = vshrl.u32 %v2064, 7
          %v2066 = vsub.s32 0, %v2065
          %v2067 = vrot.slane %v2042, %v2066
          %v2069 = vadd.f32 %v2062, %v2067
          %v2070 = vpack.c.bf16 %v2069, %v2069
          %v2071 = vld [vmem:[%s10] sm:$0xf]
          %v2072 = vld [vmem:[%s10 + $0x4] sm:$0xf]
          %v2073 = vld [vmem:[%s10 + $0x8] sm:$0xf]
          %v2074 = vld [vmem:[%s10 + $0xc] sm:$0xf]
          %v2075 = vld [vmem:[%s10 + $0x10] sm:$0xf]
          %v2076 = vld [vmem:[%s10 + $0x14] sm:$0xf]
          %v2077 = vld [vmem:[%s10 + $0x18] sm:$0xf]
          %v2078 = vld [vmem:[%s10 + $0x1c] sm:$0xf]
          %v2079 = vld [vmem:[%s11] sm:$0x1]
          %v2081 = vlaneseq
          %v2082 = vshrl.u32 %v2081, 7
          %v2083 = vsub.s32 0, %v2082
          %v2084 = vrot.slane %v2079, %v2083
          %v2094 = vunpack.c.l.b16 %v2071
          %v2095 = vunpack.c.l.b16 %v2072
          %v2096 = vunpack.c.l.b16 %v2073
          %v2097 = vunpack.c.l.b16 %v2074
          %v2098 = vunpack.c.l.b16 %v2075
          %v2099 = vunpack.c.l.b16 %v2076
          %v2100 = vunpack.c.l.b16 %v2077
          %v2101 = vunpack.c.l.b16 %v2078
          %v2102 = vpack.c.b16 %v2095, %v2094
          %v2103 = vpack.c.b16 %v2097, %v2096
          %v2104 = vpack.c.b16 %v2099, %v2098
          %v2105 = vpack.c.b16 %v2101, %v2100
          %v2111 = vsel %vm585, %v2070, 0
          %2113 = vmatprep.subr.bf16.mxu0 0
          %2114 = vmatpush1.bf16.msra.mxu0 %v2102
          %2115 = vmatprep.subr.bf16.mxu0 0
          %2116 = vmatpush1.bf16.msra.mxu0 %v2103
          %2117 = vmatprep.subr.bf16.mxu0 0
          %2118 = vmatpush1.bf16.msra.mxu0 %v2104
          %2119 = vmatprep.subr.bf16.mxu0 0
          %2120 = vmatpush1.bf16.msra.mxu0 %v2105
          %2121 = vmatprep.subr.bf16.mxu0 0
          %2122 = vmatpush1.bf16.msra.mxu0 0
          %2123 = vmatprep.subr.bf16.mxu0 0
          %2124 = vmatpush1.bf16.msra.mxu0 0
          %2125 = vmatprep.subr.bf16.mxu0 0
          %2126 = vmatpush1.bf16.msra.mxu0 0
          %2127 = vmatprep.subr.bf16.mxu0 0
          %2128 = vmatpush1.bf16.msra.mxu0 0
          %2129 = vmatprep.subr.bf16.mxu0 0
          %2130 = vmatpush1.bf16.msra.mxu0 0
          %2131 = vmatprep.subr.bf16.mxu0 0
          %2132 = vmatpush1.bf16.msra.mxu0 0
          %2133 = vmatprep.subr.bf16.mxu0 0
          %2134 = vmatpush1.bf16.msra.mxu0 0
          %2135 = vmatprep.subr.bf16.mxu0 0
          %2136 = vmatpush1.bf16.msra.mxu0 0
          %2137 = vmatprep.subr.bf16.mxu0 0
          %2138 = vmatpush1.bf16.msra.mxu0 0
          %2139 = vmatprep.subr.bf16.mxu0 0
          %2140 = vmatpush1.bf16.msra.mxu0 0
          %2141 = vmatprep.subr.bf16.mxu0 0
          %2142 = vmatpush1.bf16.msra.mxu0 0
          %2143 = vmatprep.subr.bf16.mxu0 0
          %2144 = vmatpush1.bf16.msra.mxu0 0
          %2145 = vmatprep.mubr.bf16.mxu0 0
          %2146 = vmatmul.mubr.bf16.gmra.mrb[0].mxu0 %v2111
          %v2147 = vpop.f32.mrb[0].mxu0
          %v2148 = vadd.f32 %v2084, %v2147
          %v2149 = vpop.f32.mrb[0].mxu0
          %v2150 = vpop.f32.mrb[0].mxu0
          %v2151 = vpop.f32.mrb[0].mxu0
          %2152 = vdwg.mxu0
          %2153 = vst [vmem:[%s524] sm:$0xff] %v2148
        $region76: #{transformer_forward.1} parent=67 // pred_fallthru
          _
        %s2154 = sand.u32 %s343, 1
        %s2155 = scalar_lea.sflag [#allocation5], %s2154
        %s2156 = sand.u32 %s343, 1
        %s2157 = smul.addr %s2156, 8
        %s2158 = scalar_lea.vmem [#allocation4], %s2157
        // Predicated region
        $region77: #{transformer_forward.1} parent=67 // pred_check
          %p2159 = pneg %p353
        $region78: #{transformer_forward.1} parent=67 // pred_check_branch
          %2161 = sbr.rel (%p2159) target = $region80
        $region79: #{transformer_forward.1} parent=67 // pred_region
          %s2163 = ssub.s32 128, 128
          %2164 = vsyncadd %s2155, %s2163
          %s2165 = smul.addr %s30, 128
          %s2166 = scalar_lea.hbm %s12, %s2165
          %s2168 = sshll.u32 %s2158, 4
          %s2169 = int_to_ptr.vmem [resolvable:$true] %s2168
          %2171 = dma.vmem_to_hbm [thread:$0]  %s2169, 128, %s2166, %s2155
        $region80: #{transformer_forward.1} parent=67 // pred_fallthru
          _
      $region68: #{transformer_forward.1} parent=5 // pred_fallthru
        _
      %p2172 = scmp.le.s32.totalorder 2, %s21
      // Predicated region
      $region81: #{transformer_forward.1} parent=5 // pred_check
        %p2173 = pneg %p2172
      $region82: #{transformer_forward.1} parent=5 // pred_check_branch
        %2175 = sbr.rel (%p2173) target = $region84
      $region83: #{transformer_forward.1} parent=5 // pred_region
        %s2176 = ssub.s32 %s21, 2
        // Predicated region
        $region85: #{transformer_forward.1} parent=83 // pred_check
          %p2177 = pneg %p359
        $region86: #{transformer_forward.1} parent=83 // pred_check_branch
          %2179 = sbr.rel (%p2177) target = $region88
        $region87: #{transformer_forward.1} parent=83 // pred_region
          %s2180 = sand.u32 %s344, 1
          %s2181 = scalar_lea.sflag [#allocation5], %s2180
          %s2182 = sand.u32 %s344, 1
          %s2183 = smul.addr %s2182, 8
          %s2184 = scalar_lea.vmem [#allocation4], %s2183
          %2185 = dma.done %s2181, 128
        $region88: #{transformer_forward.1} parent=83 // pred_fallthru
          _
      $region84: #{transformer_forward.1} parent=5 // pred_fallthru
        _
    $region6: #{transformer_forward.1} parent=1 // loop_footer
      %s25 = sadd.s32 1, %s21
    $region7: #{transformer_forward.1} parent=1 // loop_footer_branch
      %20 = sbr.rel target = $region3
    $region8: #{transformer_forward.1} parent=1 // loop_exit
      _
    %2186 = vsyncpa [#allocation5], 1
    %s2187 = scalar_lea.sflag [#allocation5], 1
    %2188 = vsyncpa %s2187, 1

</llo_original>
